<compile_context>
chip_gen: v7x
topology: tpu7x:2x2x1
jax: 0.10.0
libtpu: 0.0.40
codegen_flags: <defaults>
</compile_context>

<pallas_src>
import functools

import jax
import jax.numpy as jnp
from jax.experimental import pallas as pl
from jax.experimental.pallas import tpu as pltpu


# ----------------------------------------------------------------------------
# Hardware / budget helpers
# ----------------------------------------------------------------------------
def _vmem_capacity_bytes():
    """Physical VMEM per core; falls back to the conservative v7x value."""
    try:
        info = pltpu.get_tpu_info()
        cap = int(getattr(info, "vmem_capacity_bytes", 0))
        if cap > 0:
            return cap
    except Exception:
        pass
    return 64 * 1024 * 1024


def _vmem_ceiling():
    # Leave headroom for Mosaic-internal scratch / XLA buffers:
    # ~100 MiB on 128 MiB parts (v5e/v6e), ~60 MiB on 64 MiB parts (v7x).
    return min(_vmem_capacity_bytes() - (4 << 20), 100 << 20)


def _vmem_bytes_estimate(tm, th, C, H, out_itemsize, distribute_r,
                         single_buffer):
    """Rough VMEM footprint of one kernel configuration."""
    nh = H // th
    weights_resident = (nh == 1) and single_buffer
    wbuf = 1 if weights_resident else 2           # streamed weights dbl-buffer
    const_buf = 1 if single_buffer else 2         # constant-index inputs
    est = 0
    est += 2 * tm * C * 4                         # x tile (f32, dbl-buffered)
    est += 2 * 8 * C * 4                          # time-shift carry block
    est += const_buf * 2 * C * 4                  # time_maa_k / time_maa_r
    est += wbuf * C * th * 2                      # w_key tile (bf16)
    est += wbuf * th * C * 2                      # w_value tile (bf16)
    if distribute_r:
        est += 2 * (C // nh) * C * 2              # streamed w_receptance tile
    else:
        est += const_buf * C * C * 2              # resident w_receptance
    est += 2 * tm * C * out_itemsize              # output tile
    est += tm * C * 2                             # xk scratch (bf16)
    if distribute_r:
        est += tm * C * 2                         # xr scratch (bf16)
    est += 2 * tm * C * 4                         # kv / r accumulators (f32)
    return est


def _choose_tiles(T, C, H, out_itemsize, ceiling):
    """Pick (tm, th, distribute_r) that fits the per-generation VMEM budget."""
    tms = [t for t in (512, 256, 128, 64, 32, 16, 8) if T % t == 0]
    if not tms:
        raise ValueError("sequence length must be a multiple of 8")
    ths = []
    for t in (H, 2048, 1024, 512, 256, 128):
        if H % t == 0 and t <= H and t not in ths:
            ths.append(t)

    def fits(tm, th, dist):
        return _vmem_bytes_estimate(tm, th, C, H, out_itemsize, dist,
                                    True) <= ceiling

    # Pass 1: weights fully resident (nh == 1) -> each weight is read from HBM
    # exactly once (the win on v5e/v6e with 128 MiB VMEM).
    big_tms = [t for t in tms if t >= 256] or tms[:1]
    for tm in big_tms:
        if fits(tm, H, False):
            return tm, H, False
    # Pass 2: stream the hidden dimension; prefer large row tiles (weight HBM
    # bytes per output row scale as 1/tm); keep Wr resident when it fits,
    # otherwise distribute it over the reduction axis (v7x).
    for tm in tms:
        for th in ths:
            nh = H // th
            options = [False]
            if nh > 1 and C % nh == 0 and (C // nh) % 128 == 0:
                options.append(True)
            for dist in options:
                if fits(tm, th, dist):
                    return tm, th, dist
    # Nothing fits the budget: take the smallest tiles and hope for the best.
    nh = H // ths[-1]
    dist = nh > 1 and C % nh == 0 and (C // nh) % 128 == 0
    return tms[-1], ths[-1], dist


# ----------------------------------------------------------------------------
# Kernel
# ----------------------------------------------------------------------------
def _cmix_body(x_ref, carry_ref, maa_k_ref, maa_r_ref,
               wk_ref, wr_ref, wv_ref, o_ref,
               xk_scr, xr_scr, kv_acc, r_acc, *, distribute_r):
    """One (batch, row-tile, hidden-tile) grid step.

    x_ref     : (tm, C)        current row tile (resident across the h axis)
    carry_ref : (8,  C)        rows ending just before this tile (masked i==0)
    maa_*_ref : (1,  C)
    wk_ref    : (C, th)  bf16
    wr_ref    : (C, C) or (C // nh, C)  bf16
    wv_ref    : (th, C)  bf16
    o_ref     : (tm, C)
    scratch   : xk_scr bf16 [, xr_scr bf16], kv_acc f32, r_acc f32
    """
    i = pl.program_id(1)                 # row-tile index within the batch
    h = pl.program_id(2)                 # hidden-tile index (reduction axis)
    nh = pl.num_programs(2)

    # ---- prologue, hoisted out of the H-reduction loop ---------------------
    @pl.when(h == 0)
    def _():
        x = x_ref[...].astype(jnp.float32)                   # (tm, C)
        mk = maa_k_ref[...].astype(jnp.float32)               # (1, C)
        mr = maa_r_ref[...].astype(jnp.float32)

        # time_shift: xsh[t] = x[t-1]; row 0 comes from the previous tile's
        # last row (zero for the first tile of a sequence).
        rolled = pltpu.roll(x, shift=1, axis=0)
        carry = carry_ref[...].astype(jnp.float32)[-1:, :]    # (1, C)
        carry = carry * (i > 0).astype(jnp.float32)
        row0 = jax.lax.broadcasted_iota(jnp.int32, x.shape, 0) == 0
        xsh = jnp.where(row0, carry, rolled)

        xx = xsh - x
        xk = (x + xx * mk).astype(jnp.bfloat16)
        xr = (x + xx * mr).astype(jnp.bfloat16)

        xk_scr[...] = xk
        kv_acc[...] = jnp.zeros_like(kv_acc)
        if distribute_r:
            xr_scr[...] = xr
            r_acc[...] = jnp.zeros_like(r_acc)
        else:
            # Resident Wr: do the full receptance matmul once, up front, so
            # the writeback step (h == nh - 1) has no big matmul spike.
            r_acc[...] = jnp.dot(xr, wr_ref[...],
                                 preferred_element_type=jnp.float32)

    # ---- per hidden tile: kv += relu(xk @ Wk)^2 @ Wv ------------------------
    xk = xk_scr[...]
    k = jnp.dot(xk, wk_ref[...], preferred_element_type=jnp.float32)
    k = jnp.maximum(k, 0.0)
    k = k * k                                                 # (tm, th) f32
    kv_acc[...] += jnp.dot(k.astype(jnp.bfloat16), wv_ref[...],
                           preferred_element_type=jnp.float32)

    if distribute_r:
        # Streamed Wr: accumulate the receptance matmul over the same grid
        # axis, one (C // nh)-wide contraction chunk per step.
        rs = wr_ref.shape[0]                                  # static
        start = pl.multiple_of(h * rs, 128)
        xr_part = xr_scr[:, pl.ds(start, rs)]                 # (tm, rs) bf16
        r_acc[...] += jnp.dot(xr_part, wr_ref[...],
                              preferred_element_type=jnp.float32)

    # ---- epilogue: receptance gate + write ----------------------------------
    @pl.when(h == nh - 1)
    def _():
        r = jax.nn.sigmoid(r_acc[...])
        o_ref[...] = (r * kv_acc[...]).astype(o_ref.dtype)


def _make_kernel(distribute_r):
    if distribute_r:
        def kernel(x_ref, carry_ref, mk, mr, wk, wr, wv, o_ref,
                   xk_scr, xr_scr, kv_acc, r_acc):
            _cmix_body(x_ref, carry_ref, mk, mr, wk, wr, wv, o_ref,
                       xk_scr, xr_scr, kv_acc, r_acc, distribute_r=True)
    else:
        def kernel(x_ref, carry_ref, mk, mr, wk, wr, wv, o_ref,
                   xk_scr, kv_acc, r_acc):
            _cmix_body(x_ref, carry_ref, mk, mr, wk, wr, wv, o_ref,
                       xk_scr, None, kv_acc, r_acc, distribute_r=False)
    return kernel


@functools.partial(
    jax.jit,
    static_argnames=("tm", "th", "distribute_r", "single_buffer"))
def _cmix_pallas(x, maa_k, maa_r, w_key, w_receptance, w_value, *,
                 tm, th, distribute_r, single_buffer):
    B, T, C = x.shape
    H = w_key.shape[1]
    nh = H // th
    n_tb = tm // 8                       # carry-block index units (8 rows each)
    out_itemsize = jnp.dtype(x.dtype).itemsize

    # bf16 weights for the MXU (halves weight HBM/VMEM traffic).
    wk = w_key.astype(jnp.bfloat16)
    wr = w_receptance.astype(jnp.bfloat16)
    wv = w_value.astype(jnp.bfloat16)

    sb = dict(pipeline_mode=pl.Buffered(1)) if single_buffer else {}
    wsb = sb if nh == 1 else {}          # weights are constant-index iff nh==1

    in_specs = [
        # current row tile of x (index constant over h -> stays resident)
        pl.BlockSpec((pl.Squeezed(), tm, C), lambda b, i, h: (b, i, 0)),
        # 8-row carry block whose last row is x[b, i*tm - 1]
        pl.BlockSpec((pl.Squeezed(), 8, C),
                     lambda b, i, h: (b, jnp.maximum(i * n_tb - 1, 0), 0)),
        pl.BlockSpec((1, C), lambda b, i, h: (0, 0), **sb),    # time_maa_k
        pl.BlockSpec((1, C), lambda b, i, h: (0, 0), **sb),    # time_maa_r
        pl.BlockSpec((C, th), lambda b, i, h: (0, h), **wsb),  # w_key tile
    ]
    if distribute_r:
        rs = C // nh
        in_specs.append(pl.BlockSpec((rs, C), lambda b, i, h: (h, 0)))
    else:
        in_specs.append(pl.BlockSpec((C, C), lambda b, i, h: (0, 0), **sb))
    in_specs.append(pl.BlockSpec((th, C), lambda b, i, h: (h, 0), **wsb))

    scratch = [pltpu.VMEM((tm, C), jnp.bfloat16)]               # xk
    if distribute_r:
        scratch.append(pltpu.VMEM((tm, C), jnp.bfloat16))       # xr
    scratch += [pltpu.VMEM((tm, C), jnp.float32),               # kv accumulator
                pltpu.VMEM((tm, C), jnp.float32)]               # r accumulator

    grid_spec = pltpu.PrefetchScalarGridSpec(
        num_scalar_prefetch=0,
        grid=(B, T // tm, nh),
        in_specs=in_specs,
        out_specs=pl.BlockSpec((pl.Squeezed(), tm, C),
                               lambda b, i, h: (b, i, 0)),
        scratch_shapes=scratch,
    )

    est = _vmem_bytes_estimate(tm, th, C, H, out_itemsize, distribute_r,
                               single_buffer)
    cap = _vmem_capacity_bytes()
    vmem_limit = int(min(max(int(est * 1.35) + (2 << 20), 32 << 20),
                         max(32 << 20, cap - (4 << 20))))

    # HBM traffic: weights are re-streamed once per row tile unless resident.
    n_row_tiles = B * (T // tm)
    w_reads = 1 if nh == 1 else n_row_tiles
    wr_reads = n_row_tiles if distribute_r else 1
    cost = pl.CostEstimate(
        flops=2 * B * T * (C * H + H * C + C * C),
        transcendentals=B * T * C,                              # sigmoid
        bytes_accessed=(B * T * C * 4                           # x
                        + n_row_tiles * 8 * C * 4               # carry reads
                        + B * T * C * out_itemsize              # output
                        + 2 * C * 4                             # time_maa_{k,r}
                        + w_reads * (C * H + H * C) * 2         # wk, wv (bf16)
                        + wr_reads * C * C * 2))                # wr (bf16)

    return pl.pallas_call(
        _make_kernel(distribute_r),
        out_shape=jax.ShapeDtypeStruct((B, T, C), x.dtype),
        grid_spec=grid_spec,
        compiler_params=pltpu.CompilerParams(
            dimension_semantics=("parallel", "parallel", "arbitrary"),
            vmem_limit_bytes=vmem_limit),
        cost_estimate=cost,
    )(x, x, maa_k, maa_r, wk, wr, wv)


# ----------------------------------------------------------------------------
# Public wrapper
# ----------------------------------------------------------------------------
def rwkv_cmix_x060(x, time_maa_k, time_maa_r, w_key, w_receptance, w_value,
                   *, tm=None, th=None, distribute_r=None):
    """Pallas forward of RWKV_CMix_x060.

    Args:
      x:            (B, T, C) activations.
      time_maa_k:   (1, C) or (1, 1, C)
      time_maa_r:   (1, C) or (1, 1, C)
      w_key:        (C, H)   so that key(x)        == x @ w_key
      w_receptance: (C, C)   so that receptance(x) == x @ w_receptance
      w_value:      (H, C)   so that value(k)      == k @ w_value
      tm, th:       optional row tile (along T) / hidden tile (along H).
      distribute_r: optional override to stream w_receptance over the
                    reduction axis (requires (C // (H // th)) % 128 == 0).
    Returns:
      (B, T, C), dtype of x.
    """
    B, T, C = x.shape
    H = w_key.shape[1]
    if C % 128 != 0:
        raise ValueError("n_embd must be a multiple of 128 (lane-dense output)")
    if H % 128 != 0:
        raise ValueError("hidden size must be a multiple of 128")
    if T % 8 != 0:
        raise ValueError("sequence length must be a multiple of 8")

    out_itemsize = jnp.dtype(x.dtype).itemsize
    ceiling = _vmem_ceiling()

    if tm is None or th is None:
        auto_tm, auto_th, _ = _choose_tiles(T, C, H, out_itemsize, ceiling)
        if tm is None:
            tm = auto_tm
        if th is None:
            th = auto_th

    if T % tm != 0 or tm % 8 != 0:
        raise ValueError(f"tm={tm} must divide T={T} and be a multiple of 8")
    if H % th != 0 or th % 128 != 0:
        raise ValueError(f"th={th} must divide H={H} and be a multiple of 128")

    nh = H // th
    dist_ok = nh > 1 and C % nh == 0 and (C // nh) % 128 == 0
    if distribute_r is None:
        # Stream Wr over the reduction axis only when keeping it resident
        # would not fit the VMEM budget (the v7x / large-C case).
        resident_est = _vmem_bytes_estimate(tm, th, C, H, out_itemsize,
                                            False, True)
        distribute_r = bool(dist_ok and resident_est > ceiling)
    if distribute_r and not dist_ok:
        raise ValueError("distribute_r=True needs more than one hidden tile "
                         "and C // (H // th) to be a multiple of 128")

    maa_k = jnp.asarray(time_maa_k).reshape(1, C)
    maa_r = jnp.asarray(time_maa_r).reshape(1, C)

    # Try the preferred configuration first; fall back gracefully if the
    # running jax build rejects pipeline_mode=pl.Buffered(1) or the dynamic
    # lane slice used by the distributed-receptance path.
    configs = []
    for dist in ((True, False) if distribute_r else (False,)):
        for sbuf in (True, False):
            configs.append((dist, sbuf))
    last_err = None
    for dist, sbuf in configs:
        try:
            return _cmix_pallas(x, maa_k, maa_r, w_key, w_receptance, w_value,
                                tm=tm, th=th, distribute_r=dist,
                                single_buffer=sbuf)
        except Exception as err:   # graceful degradation across jax versions
            last_err = err
    raise last_err


# ----------------------------------------------------------------------------
# Parameters + reference (matches the kernel's bf16-MXU / f32-accum recipe)
# ----------------------------------------------------------------------------
def make_params(n_embd, n_layer, layer_id, hidden_rate=4):
    """Deterministic parameter init mirroring the module's __init__ shapes."""
    hidden_sz = hidden_rate * n_embd

    ratio_1_to_almost0 = 1.0 - layer_id / n_layer
    ddd = jnp.arange(n_embd, dtype=jnp.float32) / n_embd
    time_maa_k = (1.0 - jnp.power(ddd, ratio_1_to_almost0)).reshape(1, n_embd)
    time_maa_r = time_maa_k  # identical init in the PyTorch module

    key = jax.random.PRNGKey(0)
    k1, k2, k3 = jax.random.split(key, 3)
    # Linear weights stored already transposed so the kernel does x @ W:
    #   key:        n_embd -> hidden_sz   => (C, H)
    #   receptance: n_embd -> n_embd      => (C, C)
    #   value:      hidden_sz -> n_embd   => (H, C)
    w_key = jax.random.normal(k1, (n_embd, hidden_sz), jnp.float32) * 0.02
    w_receptance = jax.random.normal(k2, (n_embd, n_embd), jnp.float32) * 0.02
    w_value = jax.random.normal(k3, (hidden_sz, n_embd), jnp.float32) * 0.02
    return time_maa_k, time_maa_r, w_key, w_receptance, w_value


def reference_cmix_bf16(x, time_maa_k, time_maa_r, w_key, w_receptance,
                        w_value):
    """Plain-JAX reference matching the kernel's bf16-matmul / f32-accum math."""
    C = x.shape[-1]
    maa_k = jnp.asarray(time_maa_k).reshape(1, 1, C)
    maa_r = jnp.asarray(time_maa_r).reshape(1, 1, C)
    x_shifted = jnp.pad(x, ((0, 0), (1, 0), (0, 0)))[:, :-1, :]
    xx = x_shifted - x
    xk = (x + xx * maa_k).astype(jnp.bfloat16)
    xr = (x + xx * maa_r).astype(jnp.bfloat16)
    wk = w_key.astype(jnp.bfloat16)
    wr = w_receptance.astype(jnp.bfloat16)
    wv = w_value.astype(jnp.bfloat16)
    k = jnp.einsum("btc,ch->bth", xk, wk, preferred_element_type=jnp.float32)
    k = jnp.maximum(k, 0.0) ** 2
    kv = jnp.einsum("bth,hc->btc", k.astype(jnp.bfloat16), wv,
                    preferred_element_type=jnp.float32)
    r = jax.nn.sigmoid(jnp.einsum("btc,cd->btd", xr, wr,
                                  preferred_element_type=jnp.float32))
    return r * kv


if __name__ == "__main__":

    def run_case(name, B, T, n_embd, hidden_rate, **kw):
        params = make_params(n_embd, n_layer=4, layer_id=1,
                             hidden_rate=hidden_rate)
        x = jax.random.normal(jax.random.PRNGKey(0), (B, T, n_embd),
                              jnp.float32)
        out = jax.block_until_ready(rwkv_cmix_x060(x, *params, **kw))
        ref = reference_cmix_bf16(x, *params)
        assert out.shape == (B, T, n_embd)
        max_err = float(jnp.max(jnp.abs(out - ref)))
        assert jnp.allclose(out, ref, atol=3e-3, rtol=3e-2), (
            f"{name}: mismatch vs reference, max abs err = {max_err}")

    # 1) auto config: weights resident (nh == 1), one grid step per row tile.
    run_case("auto", B=2, T=16, n_embd=128, hidden_rate=4)
    # 2) forced H-reduction with resident Wr: exercises the time-shift carry
    #    across row tiles and the kv accumulator (nh = 4).
    run_case("reduction", B=2, T=16, n_embd=128, hidden_rate=4, tm=8, th=128)
    # 3) forced distributed receptance (streamed Wr tiles, v7x-style):
    #    C=256, H=1024, th=512 -> nh=2, 128-lane contraction chunks.
    run_case("distributed_r", B=2, T=16, n_embd=256, hidden_rate=4,
             tm=8, th=512, distribute_r=True)

    print("KERNEL_OK")
</pallas_src>

<mosaic_0001>
module attributes {stable_mosaic.version = 11 : i64} {
  func.func @kernel(%arg0: i32, %arg1: i32, %arg2: i32, %arg3: memref<1x16x128xf32, #tpu.memory_space<vmem>>, %arg4: memref<1x8x128xf32, #tpu.memory_space<vmem>>, %arg5: memref<1x128xf32, #tpu.memory_space<vmem>>, %arg6: memref<1x128xf32, #tpu.memory_space<vmem>>, %arg7: memref<128x512xbf16, #tpu.memory_space<vmem>>, %arg8: memref<128x128xbf16, #tpu.memory_space<vmem>>, %arg9: memref<512x128xbf16, #tpu.memory_space<vmem>>, %arg10: memref<1x16x128xf32, #tpu.memory_space<vmem>>, %arg11: memref<16x128xbf16, #tpu.memory_space<vmem>>, %arg12: memref<16x128xf32, #tpu.memory_space<vmem>>, %arg13: memref<16x128xf32, #tpu.memory_space<vmem>>) attributes {dimension_semantics = [#tpu.dimension_semantics<parallel>, #tpu.dimension_semantics<parallel>, #tpu.dimension_semantics<arbitrary>], iteration_bounds = array<i64: 2, 1, 1>, scalar_prefetch = 0 : i64, scratch_operands = 3 : i64, tpu.core_type = #tpu.core_type<tc>, window_params = [{transform_indices = @transform_0, window_bounds = array<i64: 1, 16, 128>}, {transform_indices = @transform_1, window_bounds = array<i64: 1, 8, 128>}, {pipeline_mode = #tpu.pipeline_mode<synchronous>, transform_indices = @transform_2, window_bounds = array<i64: 1, 128>}, {pipeline_mode = #tpu.pipeline_mode<synchronous>, transform_indices = @transform_3, window_bounds = array<i64: 1, 128>}, {pipeline_mode = #tpu.pipeline_mode<synchronous>, transform_indices = @transform_4, window_bounds = array<i64: 128, 512>}, {pipeline_mode = #tpu.pipeline_mode<synchronous>, transform_indices = @transform_5, window_bounds = array<i64: 128, 128>}, {pipeline_mode = #tpu.pipeline_mode<synchronous>, transform_indices = @transform_6, window_bounds = array<i64: 512, 128>}, {transform_indices = @transform_7, window_bounds = array<i64: 1, 16, 128>}]} {
    %c0_i32 = arith.constant 0 : i32
    %0 = arith.cmpi eq, %arg2, %c0_i32 : i32
    %1 = arith.extui %0 : i1 to i32
    %c0_i32_0 = arith.constant 0 : i32
    %2 = arith.cmpi ne, %1, %c0_i32_0 : i32
    scf.if %2 {
      %c0_14 = arith.constant 0 : index
      %c0_15 = arith.constant 0 : index
      %c0_16 = arith.constant 0 : index
      %18 = vector.load %arg3[%c0_14, %c0_15, %c0_16] : memref<1x16x128xf32, #tpu.memory_space<vmem>>, vector<1x16x128xf32>
      %19 = vector.shape_cast %18 : vector<1x16x128xf32> to vector<16x128xf32>
      %c0_17 = arith.constant 0 : index
      %c0_18 = arith.constant 0 : index
      %20 = vector.load %arg5[%c0_17, %c0_18] : memref<1x128xf32, #tpu.memory_space<vmem>>, vector<1x128xf32>
      %c0_19 = arith.constant 0 : index
      %c0_20 = arith.constant 0 : index
      %21 = vector.load %arg6[%c0_19, %c0_20] : memref<1x128xf32, #tpu.memory_space<vmem>>, vector<1x128xf32>
      %c1_i32 = arith.constant 1 : i32
      %22 = tpu.dynamic_rotate %19 by %c1_i32 dim 0 : vector<16x128xf32>, i32 -> vector<16x128xf32>
      %c0_21 = arith.constant 0 : index
      %c0_22 = arith.constant 0 : index
      %c0_23 = arith.constant 0 : index
      %23 = vector.load %arg4[%c0_21, %c0_22, %c0_23] : memref<1x8x128xf32, #tpu.memory_space<vmem>>, vector<1x8x128xf32>
      %24 = vector.shape_cast %23 : vector<1x8x128xf32> to vector<8x128xf32>
      %25 = vector.extract_strided_slice %24 {offsets = [7, 0], sizes = [1, 128], strides = [1, 1]} : vector<8x128xf32> to vector<1x128xf32>
      %c0_i32_24 = arith.constant 0 : i32
      %26 = arith.cmpi sgt, %arg1, %c0_i32_24 : i32
      %27 = arith.extui %26 : i1 to i32
      %28 = arith.sitofp %27 : i32 to f32
      %29 = vector.broadcast %28 : f32 to vector<1x128xf32>
      %30 = arith.mulf %25, %29 : vector<1x128xf32>
      %31 = tpu.iota {dimensions = array<i32: 0>} : vector<16x128xi32>
      %c0_i32_25 = arith.constant 0 : i32
      %32 = vector.broadcast %c0_i32_25 : i32 to vector<16x128xi32>
      %33 = arith.cmpi eq, %31, %32 : vector<16x128xi32>
      %34 = vector.shape_cast %30 : vector<1x128xf32> to vector<1x128xf32>
      %35 = vector.broadcast %34 : vector<1x128xf32> to vector<16x128xf32>
      %36 = arith.select %33, %35, %22 : vector<16x128xi1>, vector<16x128xf32>
      %37 = arith.subf %36, %19 : vector<16x128xf32>
      %38 = vector.broadcast %20 : vector<1x128xf32> to vector<16x128xf32>
      %39 = arith.mulf %37, %38 : vector<16x128xf32>
      %40 = arith.addf %19, %39 : vector<16x128xf32>
      %41 = arith.truncf %40 : vector<16x128xf32> to vector<16x128xbf16>
      %42 = vector.broadcast %21 : vector<1x128xf32> to vector<16x128xf32>
      %43 = arith.mulf %37, %42 : vector<16x128xf32>
      %44 = arith.addf %19, %43 : vector<16x128xf32>
      %45 = arith.truncf %44 : vector<16x128xf32> to vector<16x128xbf16>
      %c0_26 = arith.constant 0 : index
      %c0_27 = arith.constant 0 : index
      %46 = vector.load %arg11[%c0_26, %c0_27] : memref<16x128xbf16, #tpu.memory_space<vmem>>, vector<16x128xbf16>
      tpu.vector_store %arg11[%c0_26, %c0_27], %41 {strides = array<i32>} : memref<16x128xbf16, #tpu.memory_space<vmem>>, vector<16x128xbf16>,
      %cst_28 = arith.constant 0.000000e+00 : f32
      %47 = vector.broadcast %cst_28 : f32 to vector<16x128xf32>
      %c0_29 = arith.constant 0 : index
      %c0_30 = arith.constant 0 : index
      %48 = vector.load %arg12[%c0_29, %c0_30] : memref<16x128xf32, #tpu.memory_space<vmem>>, vector<16x128xf32>
      tpu.vector_store %arg12[%c0_29, %c0_30], %47 {strides = array<i32>} : memref<16x128xf32, #tpu.memory_space<vmem>>, vector<16x128xf32>,
      %c0_31 = arith.constant 0 : index
      %c0_32 = arith.constant 0 : index
      %49 = vector.load %arg8[%c0_31, %c0_32] : memref<128x128xbf16, #tpu.memory_space<vmem>>, vector<128x128xbf16>
      %cst_33 = arith.constant dense<0.000000e+00> : vector<16x128xf32>
      %50 = tpu.matmul %45, %49, %cst_33 {dimension_numbers = #tpu.dot_dimension_numbers<[1], [0], [0], [1], [0, 0, 1, 1], [], []>} : vector<16x128xbf16>, vector<128x128xbf16>, vector<16x128xf32> -> vector<16x128xf32>
      %c0_34 = arith.constant 0 : index
      %c0_35 = arith.constant 0 : index
      %51 = vector.load %arg13[%c0_34, %c0_35] : memref<16x128xf32, #tpu.memory_space<vmem>>, vector<16x128xf32>
      tpu.vector_store %arg13[%c0_34, %c0_35], %50 {strides = array<i32>} : memref<16x128xf32, #tpu.memory_space<vmem>>, vector<16x128xf32>,
    } else {
    }
    %c0 = arith.constant 0 : index
    %c0_1 = arith.constant 0 : index
    %3 = vector.load %arg11[%c0, %c0_1] : memref<16x128xbf16, #tpu.memory_space<vmem>>, vector<16x128xbf16>
    %c0_2 = arith.constant 0 : index
    %c0_3 = arith.constant 0 : index
    %4 = vector.load %arg7[%c0_2, %c0_3] : memref<128x512xbf16, #tpu.memory_space<vmem>>, vector<128x512xbf16>
    %cst = arith.constant dense<0.000000e+00> : vector<16x512xf32>
    %5 = tpu.matmul %3, %4, %cst {dimension_numbers = #tpu.dot_dimension_numbers<[1], [0], [0], [1], [0, 0, 1, 1], [], []>} : vector<16x128xbf16>, vector<128x512xbf16>, vector<16x512xf32> -> vector<16x512xf32>
    %cst_4 = arith.constant 0.000000e+00 : f32
    %6 = vector.broadcast %cst_4 : f32 to vector<16x512xf32>
    %7 = arith.maximumf %5, %6 : vector<16x512xf32>
    %8 = arith.mulf %7, %7 : vector<16x512xf32>
    %c0_5 = arith.constant 0 : index
    %c0_6 = arith.constant 0 : index
    %9 = vector.load %arg12[%c0_5, %c0_6] : memref<16x128xf32, #tpu.memory_space<vmem>>, vector<16x128xf32>
    %10 = arith.truncf %8 : vector<16x512xf32> to vector<16x512xbf16>
    %c0_7 = arith.constant 0 : index
    %c0_8 = arith.constant 0 : index
    %11 = vector.load %arg9[%c0_7, %c0_8] : memref<512x128xbf16, #tpu.memory_space<vmem>>, vector<512x128xbf16>
    %cst_9 = arith.constant dense<0.000000e+00> : vector<16x128xf32>
    %12 = tpu.matmul %10, %11, %cst_9 {dimension_numbers = #tpu.dot_dimension_numbers<[1], [0], [0], [1], [0, 0, 1, 1], [], []>} : vector<16x512xbf16>, vector<512x128xbf16>, vector<16x128xf32> -> vector<16x128xf32>
    %13 = arith.addf %9, %12 : vector<16x128xf32>
    %c0_10 = arith.constant 0 : index
    %c0_11 = arith.constant 0 : index
    %14 = vector.load %arg12[%c0_10, %c0_11] : memref<16x128xf32, #tpu.memory_space<vmem>>, vector<16x128xf32>
    tpu.vector_store %arg12[%c0_10, %c0_11], %13 {strides = array<i32>} : memref<16x128xf32, #tpu.memory_space<vmem>>, vector<16x128xf32>,
    %c0_i32_12 = arith.constant 0 : i32
    %15 = arith.cmpi eq, %arg2, %c0_i32_12 : i32
    %16 = arith.extui %15 : i1 to i32
    %c0_i32_13 = arith.constant 0 : i32
    %17 = arith.cmpi ne, %16, %c0_i32_13 : i32
    scf.if %17 {
      %c0_14 = arith.constant 0 : index
      %c0_15 = arith.constant 0 : index
      %18 = vector.load %arg13[%c0_14, %c0_15] : memref<16x128xf32, #tpu.memory_space<vmem>>, vector<16x128xf32>
      %19 = arith.negf %18 : vector<16x128xf32>
      %20 = math.exp %19 : vector<16x128xf32>
      %cst_16 = arith.constant 1.000000e+00 : f32
      %21 = vector.broadcast %cst_16 : f32 to vector<16x128xf32>
      %22 = arith.addf %21, %20 : vector<16x128xf32>
      %23 = arith.divf %21, %22 : vector<16x128xf32>
      %c0_17 = arith.constant 0 : index
      %c0_18 = arith.constant 0 : index
      %24 = vector.load %arg12[%c0_17, %c0_18] : memref<16x128xf32, #tpu.memory_space<vmem>>, vector<16x128xf32>
      %25 = arith.mulf %23, %24 : vector<16x128xf32>
      %c0_19 = arith.constant 0 : index
      %c0_20 = arith.constant 0 : index
      %c0_21 = arith.constant 0 : index
      %26 = vector.load %arg10[%c0_19, %c0_20, %c0_21] : memref<1x16x128xf32, #tpu.memory_space<vmem>>, vector<1x16x128xf32>
      %27 = vector.shape_cast %26 : vector<1x16x128xf32> to vector<16x128xf32>
      %28 = vector.shape_cast %25 : vector<16x128xf32> to vector<1x16x128xf32>
      tpu.vector_store %arg10[%c0_19, %c0_20, %c0_21], %28 {strides = array<i32>} : memref<1x16x128xf32, #tpu.memory_space<vmem>>, vector<1x16x128xf32>,
    } else {
    }
    return
  }
  func.func @transform_0(%arg0: i32, %arg1: i32, %arg2: i32) -> (i32, i32, i32) {
    %c0_i32 = arith.constant 0 : i32
    %c0_i32_0 = arith.constant 0 : i32
    return %arg0, %arg1, %c0_i32 : i32, i32, i32
  }
  func.func @transform_1(%arg0: i32, %arg1: i32, %arg2: i32) -> (i32, i32, i32) {
    %c2_i32 = arith.constant 2 : i32
    %0 = arith.muli %arg1, %c2_i32 : i32
    %c1_i32 = arith.constant 1 : i32
    %1 = arith.subi %0, %c1_i32 : i32
    %c0_i32 = arith.constant 0 : i32
    %2 = arith.maxsi %1, %c0_i32 : i32
    %c0_i32_0 = arith.constant 0 : i32
    %c0_i32_1 = arith.constant 0 : i32
    return %arg0, %2, %c0_i32_0 : i32, i32, i32
  }
  func.func @transform_2(%arg0: i32, %arg1: i32, %arg2: i32) -> (i32, i32) {
    %c0_i32 = arith.constant 0 : i32
    %c0_i32_0 = arith.constant 0 : i32
    %c0_i32_1 = arith.constant 0 : i32
    return %c0_i32, %c0_i32_0 : i32, i32
  }
  func.func @transform_3(%arg0: i32, %arg1: i32, %arg2: i32) -> (i32, i32) {
    %c0_i32 = arith.constant 0 : i32
    %c0_i32_0 = arith.constant 0 : i32
    %c0_i32_1 = arith.constant 0 : i32
    return %c0_i32, %c0_i32_0 : i32, i32
  }
  func.func @transform_4(%arg0: i32, %arg1: i32, %arg2: i32) -> (i32, i32) {
    %c0_i32 = arith.constant 0 : i32
    %c0_i32_0 = arith.constant 0 : i32
    return %c0_i32, %arg2 : i32, i32
  }
  func.func @transform_5(%arg0: i32, %arg1: i32, %arg2: i32) -> (i32, i32) {
    %c0_i32 = arith.constant 0 : i32
    %c0_i32_0 = arith.constant 0 : i32
    %c0_i32_1 = arith.constant 0 : i32
    return %c0_i32, %c0_i32_0 : i32, i32
  }
  func.func @transform_6(%arg0: i32, %arg1: i32, %arg2: i32) -> (i32, i32) {
    %c0_i32 = arith.constant 0 : i32
    %c0_i32_0 = arith.constant 0 : i32
    return %arg2, %c0_i32 : i32, i32
  }
  func.func @transform_7(%arg0: i32, %arg1: i32, %arg2: i32) -> (i32, i32, i32) {
    %c0_i32 = arith.constant 0 : i32
    %c0_i32_0 = arith.constant 0 : i32
    return %arg0, %arg1, %c0_i32 : i32, i32, i32
  }
}

module attributes {stable_mosaic.version = 11 : i64} {
  func.func @kernel(%arg0: i32, %arg1: i32, %arg2: i32, %arg3: memref<1x16x128xf32, #tpu.memory_space<vmem>>, %arg4: memref<1x8x128xf32, #tpu.memory_space<vmem>>, %arg5: memref<1x128xf32, #tpu.memory_space<vmem>>, %arg6: memref<1x128xf32, #tpu.memory_space<vmem>>, %arg7: memref<128x512xbf16, #tpu.memory_space<vmem>>, %arg8: memref<128x128xbf16, #tpu.memory_space<vmem>>, %arg9: memref<512x128xbf16, #tpu.memory_space<vmem>>, %arg10: memref<1x16x128xf32, #tpu.memory_space<vmem>>, %arg11: memref<16x128xbf16, #tpu.memory_space<vmem>>, %arg12: memref<16x128xf32, #tpu.memory_space<vmem>>, %arg13: memref<16x128xf32, #tpu.memory_space<vmem>>) attributes {dimension_semantics = [#tpu.dimension_semantics<parallel>, #tpu.dimension_semantics<parallel>, #tpu.dimension_semantics<arbitrary>], iteration_bounds = array<i64: 2, 1, 1>, scalar_prefetch = 0 : i64, scratch_operands = 3 : i64, tpu.core_type = #tpu.core_type<tc>, window_params = [{transform_indices = @transform_0, window_bounds = array<i64: 1, 16, 128>}, {transform_indices = @transform_1, window_bounds = array<i64: 1, 8, 128>}, {pipeline_mode = #tpu.pipeline_mode<synchronous>, transform_indices = @transform_2, window_bounds = array<i64: 1, 128>}, {pipeline_mode = #tpu.pipeline_mode<synchronous>, transform_indices = @transform_3, window_bounds = array<i64: 1, 128>}, {transform_indices = @transform_4, window_bounds = array<i64: 128, 512>}, {pipeline_mode = #tpu.pipeline_mode<synchronous>, transform_indices = @transform_5, window_bounds = array<i64: 128, 128>}, {transform_indices = @transform_6, window_bounds = array<i64: 512, 128>}, {transform_indices = @transform_7, window_bounds = array<i64: 1, 16, 128>}]} {
    %c0_i32 = arith.constant 0 : i32
    %0 = arith.cmpi eq, %arg2, %c0_i32 : i32
    %1 = arith.extui %0 : i1 to i32
    %c0_i32_0 = arith.constant 0 : i32
    %2 = arith.cmpi ne, %1, %c0_i32_0 : i32
    scf.if %2 {
      %c0_14 = arith.constant 0 : index
      %c0_15 = arith.constant 0 : index
      %c0_16 = arith.constant 0 : index
      %18 = vector.load %arg3[%c0_14, %c0_15, %c0_16] : memref<1x16x128xf32, #tpu.memory_space<vmem>>, vector<1x16x128xf32>
      %19 = vector.shape_cast %18 : vector<1x16x128xf32> to vector<16x128xf32>
      %c0_17 = arith.constant 0 : index
      %c0_18 = arith.constant 0 : index
      %20 = vector.load %arg5[%c0_17, %c0_18] : memref<1x128xf32, #tpu.memory_space<vmem>>, vector<1x128xf32>
      %c0_19 = arith.constant 0 : index
      %c0_20 = arith.constant 0 : index
      %21 = vector.load %arg6[%c0_19, %c0_20] : memref<1x128xf32, #tpu.memory_space<vmem>>, vector<1x128xf32>
      %c1_i32 = arith.constant 1 : i32
      %22 = tpu.dynamic_rotate %19 by %c1_i32 dim 0 : vector<16x128xf32>, i32 -> vector<16x128xf32>
      %c0_21 = arith.constant 0 : index
      %c0_22 = arith.constant 0 : index
      %c0_23 = arith.constant 0 : index
      %23 = vector.load %arg4[%c0_21, %c0_22, %c0_23] : memref<1x8x128xf32, #tpu.memory_space<vmem>>, vector<1x8x128xf32>
      %24 = vector.shape_cast %23 : vector<1x8x128xf32> to vector<8x128xf32>
      %25 = vector.extract_strided_slice %24 {offsets = [7, 0], sizes = [1, 128], strides = [1, 1]} : vector<8x128xf32> to vector<1x128xf32>
      %c0_i32_24 = arith.constant 0 : i32
      %26 = arith.cmpi sgt, %arg1, %c0_i32_24 : i32
      %27 = arith.extui %26 : i1 to i32
      %28 = arith.sitofp %27 : i32 to f32
      %29 = vector.broadcast %28 : f32 to vector<1x128xf32>
      %30 = arith.mulf %25, %29 : vector<1x128xf32>
      %31 = tpu.iota {dimensions = array<i32: 0>} : vector<16x128xi32>
      %c0_i32_25 = arith.constant 0 : i32
      %32 = vector.broadcast %c0_i32_25 : i32 to vector<16x128xi32>
      %33 = arith.cmpi eq, %31, %32 : vector<16x128xi32>
      %34 = vector.shape_cast %30 : vector<1x128xf32> to vector<1x128xf32>
      %35 = vector.broadcast %34 : vector<1x128xf32> to vector<16x128xf32>
      %36 = arith.select %33, %35, %22 : vector<16x128xi1>, vector<16x128xf32>
      %37 = arith.subf %36, %19 : vector<16x128xf32>
      %38 = vector.broadcast %20 : vector<1x128xf32> to vector<16x128xf32>
      %39 = arith.mulf %37, %38 : vector<16x128xf32>
      %40 = arith.addf %19, %39 : vector<16x128xf32>
      %41 = arith.truncf %40 : vector<16x128xf32> to vector<16x128xbf16>
      %42 = vector.broadcast %21 : vector<1x128xf32> to vector<16x128xf32>
      %43 = arith.mulf %37, %42 : vector<16x128xf32>
      %44 = arith.addf %19, %43 : vector<16x128xf32>
      %45 = arith.truncf %44 : vector<16x128xf32> to vector<16x128xbf16>
      %c0_26 = arith.constant 0 : index
      %c0_27 = arith.constant 0 : index
      %46 = vector.load %arg11[%c0_26, %c0_27] : memref<16x128xbf16, #tpu.memory_space<vmem>>, vector<16x128xbf16>
      tpu.vector_store %arg11[%c0_26, %c0_27], %41 {strides = array<i32>} : memref<16x128xbf16, #tpu.memory_space<vmem>>, vector<16x128xbf16>,
      %cst_28 = arith.constant 0.000000e+00 : f32
      %47 = vector.broadcast %cst_28 : f32 to vector<16x128xf32>
      %c0_29 = arith.constant 0 : index
      %c0_30 = arith.constant 0 : index
      %48 = vector.load %arg12[%c0_29, %c0_30] : memref<16x128xf32, #tpu.memory_space<vmem>>, vector<16x128xf32>
      tpu.vector_store %arg12[%c0_29, %c0_30], %47 {strides = array<i32>} : memref<16x128xf32, #tpu.memory_space<vmem>>, vector<16x128xf32>,
      %c0_31 = arith.constant 0 : index
      %c0_32 = arith.constant 0 : index
      %49 = vector.load %arg8[%c0_31, %c0_32] : memref<128x128xbf16, #tpu.memory_space<vmem>>, vector<128x128xbf16>
      %cst_33 = arith.constant dense<0.000000e+00> : vector<16x128xf32>
      %50 = tpu.matmul %45, %49, %cst_33 {dimension_numbers = #tpu.dot_dimension_numbers<[1], [0], [0], [1], [0, 0, 1, 1], [], []>} : vector<16x128xbf16>, vector<128x128xbf16>, vector<16x128xf32> -> vector<16x128xf32>
      %c0_34 = arith.constant 0 : index
      %c0_35 = arith.constant 0 : index
      %51 = vector.load %arg13[%c0_34, %c0_35] : memref<16x128xf32, #tpu.memory_space<vmem>>, vector<16x128xf32>
      tpu.vector_store %arg13[%c0_34, %c0_35], %50 {strides = array<i32>} : memref<16x128xf32, #tpu.memory_space<vmem>>, vector<16x128xf32>,
    } else {
    }
    %c0 = arith.constant 0 : index
    %c0_1 = arith.constant 0 : index
    %3 = vector.load %arg11[%c0, %c0_1] : memref<16x128xbf16, #tpu.memory_space<vmem>>, vector<16x128xbf16>
    %c0_2 = arith.constant 0 : index
    %c0_3 = arith.constant 0 : index
    %4 = vector.load %arg7[%c0_2, %c0_3] : memref<128x512xbf16, #tpu.memory_space<vmem>>, vector<128x512xbf16>
    %cst = arith.constant dense<0.000000e+00> : vector<16x512xf32>
    %5 = tpu.matmul %3, %4, %cst {dimension_numbers = #tpu.dot_dimension_numbers<[1], [0], [0], [1], [0, 0, 1, 1], [], []>} : vector<16x128xbf16>, vector<128x512xbf16>, vector<16x512xf32> -> vector<16x512xf32>
    %cst_4 = arith.constant 0.000000e+00 : f32
    %6 = vector.broadcast %cst_4 : f32 to vector<16x512xf32>
    %7 = arith.maximumf %5, %6 : vector<16x512xf32>
    %8 = arith.mulf %7, %7 : vector<16x512xf32>
    %c0_5 = arith.constant 0 : index
    %c0_6 = arith.constant 0 : index
    %9 = vector.load %arg12[%c0_5, %c0_6] : memref<16x128xf32, #tpu.memory_space<vmem>>, vector<16x128xf32>
    %10 = arith.truncf %8 : vector<16x512xf32> to vector<16x512xbf16>
    %c0_7 = arith.constant 0 : index
    %c0_8 = arith.constant 0 : index
    %11 = vector.load %arg9[%c0_7, %c0_8] : memref<512x128xbf16, #tpu.memory_space<vmem>>, vector<512x128xbf16>
    %cst_9 = arith.constant dense<0.000000e+00> : vector<16x128xf32>
    %12 = tpu.matmul %10, %11, %cst_9 {dimension_numbers = #tpu.dot_dimension_numbers<[1], [0], [0], [1], [0, 0, 1, 1], [], []>} : vector<16x512xbf16>, vector<512x128xbf16>, vector<16x128xf32> -> vector<16x128xf32>
    %13 = arith.addf %9, %12 : vector<16x128xf32>
    %c0_10 = arith.constant 0 : index
    %c0_11 = arith.constant 0 : index
    %14 = vector.load %arg12[%c0_10, %c0_11] : memref<16x128xf32, #tpu.memory_space<vmem>>, vector<16x128xf32>
    tpu.vector_store %arg12[%c0_10, %c0_11], %13 {strides = array<i32>} : memref<16x128xf32, #tpu.memory_space<vmem>>, vector<16x128xf32>,
    %c0_i32_12 = arith.constant 0 : i32
    %15 = arith.cmpi eq, %arg2, %c0_i32_12 : i32
    %16 = arith.extui %15 : i1 to i32
    %c0_i32_13 = arith.constant 0 : i32
    %17 = arith.cmpi ne, %16, %c0_i32_13 : i32
    scf.if %17 {
      %c0_14 = arith.constant 0 : index
      %c0_15 = arith.constant 0 : index
      %18 = vector.load %arg13[%c0_14, %c0_15] : memref<16x128xf32, #tpu.memory_space<vmem>>, vector<16x128xf32>
      %19 = arith.negf %18 : vector<16x128xf32>
      %20 = math.exp %19 : vector<16x128xf32>
      %cst_16 = arith.constant 1.000000e+00 : f32
      %21 = vector.broadcast %cst_16 : f32 to vector<16x128xf32>
      %22 = arith.addf %21, %20 : vector<16x128xf32>
      %23 = arith.divf %21, %22 : vector<16x128xf32>
      %c0_17 = arith.constant 0 : index
      %c0_18 = arith.constant 0 : index
      %24 = vector.load %arg12[%c0_17, %c0_18] : memref<16x128xf32, #tpu.memory_space<vmem>>, vector<16x128xf32>
      %25 = arith.mulf %23, %24 : vector<16x128xf32>
      %c0_19 = arith.constant 0 : index
      %c0_20 = arith.constant 0 : index
      %c0_21 = arith.constant 0 : index
      %26 = vector.load %arg10[%c0_19, %c0_20, %c0_21] : memref<1x16x128xf32, #tpu.memory_space<vmem>>, vector<1x16x128xf32>
      %27 = vector.shape_cast %26 : vector<1x16x128xf32> to vector<16x128xf32>
      %28 = vector.shape_cast %25 : vector<16x128xf32> to vector<1x16x128xf32>
      tpu.vector_store %arg10[%c0_19, %c0_20, %c0_21], %28 {strides = array<i32>} : memref<1x16x128xf32, #tpu.memory_space<vmem>>, vector<1x16x128xf32>,
    } else {
    }
    return
  }
  func.func @transform_0(%arg0: i32, %arg1: i32, %arg2: i32) -> (i32, i32, i32) {
    %c0_i32 = arith.constant 0 : i32
    %c0_i32_0 = arith.constant 0 : i32
    return %arg0, %arg1, %c0_i32 : i32, i32, i32
  }
  func.func @transform_1(%arg0: i32, %arg1: i32, %arg2: i32) -> (i32, i32, i32) {
    %c2_i32 = arith.constant 2 : i32
    %0 = arith.muli %arg1, %c2_i32 : i32
    %c1_i32 = arith.constant 1 : i32
    %1 = arith.subi %0, %c1_i32 : i32
    %c0_i32 = arith.constant 0 : i32
    %2 = arith.maxsi %1, %c0_i32 : i32
    %c0_i32_0 = arith.constant 0 : i32
    %c0_i32_1 = arith.constant 0 : i32
    return %arg0, %2, %c0_i32_0 : i32, i32, i32
  }
  func.func @transform_2(%arg0: i32, %arg1: i32, %arg2: i32) -> (i32, i32) {
    %c0_i32 = arith.constant 0 : i32
    %c0_i32_0 = arith.constant 0 : i32
    %c0_i32_1 = arith.constant 0 : i32
    return %c0_i32, %c0_i32_0 : i32, i32
  }
  func.func @transform_3(%arg0: i32, %arg1: i32, %arg2: i32) -> (i32, i32) {
    %c0_i32 = arith.constant 0 : i32
    %c0_i32_0 = arith.constant 0 : i32
    %c0_i32_1 = arith.constant 0 : i32
    return %c0_i32, %c0_i32_0 : i32, i32
  }
  func.func @transform_4(%arg0: i32, %arg1: i32, %arg2: i32) -> (i32, i32) {
    %c0_i32 = arith.constant 0 : i32
    %c0_i32_0 = arith.constant 0 : i32
    return %c0_i32, %arg2 : i32, i32
  }
  func.func @transform_5(%arg0: i32, %arg1: i32, %arg2: i32) -> (i32, i32) {
    %c0_i32 = arith.constant 0 : i32
    %c0_i32_0 = arith.constant 0 : i32
    %c0_i32_1 = arith.constant 0 : i32
    return %c0_i32, %c0_i32_0 : i32, i32
  }
  func.func @transform_6(%arg0: i32, %arg1: i32, %arg2: i32) -> (i32, i32) {
    %c0_i32 = arith.constant 0 : i32
    %c0_i32_0 = arith.constant 0 : i32
    return %arg2, %c0_i32 : i32, i32
  }
  func.func @transform_7(%arg0: i32, %arg1: i32, %arg2: i32) -> (i32, i32, i32) {
    %c0_i32 = arith.constant 0 : i32
    %c0_i32_0 = arith.constant 0 : i32
    return %arg0, %arg1, %c0_i32 : i32, i32, i32
  }
}

</mosaic_0001>

<llo_original>
// kernel: _cmix_pallas.1
$region0: #{_cmix_pallas.1}
  #allocation0 [shape = 'u32[]', space=smem, size = 0x4, offset = 0x4, fixed_abs, tag = 'smem constant byte address 0x4 - core index']
  #allocation1 [shape = 'u32[144,128]{1,0:T(1,128)}', space=vmem, size = 0x12000, scoped, tag = 'internal scratch']
  #allocation2 [shape = 'bf16[16,128]{1,0:T(16,128)(2,1)}', space=vmem, size = 0x1000, scoped, tag = 'scratch operand']
  #allocation3 [shape = 'f32[16,128]{1,0:T(8,128)}', space=vmem, size = 0x2000, scoped, tag = 'scratch operand']
  #allocation4 [shape = 'f32[16,128]{1,0:T(8,128)}', space=vmem, size = 0x2000, scoped, tag = 'scratch operand']
  %s0 = inlined_call_operand.vmem [shape: f32[2,16,128], index: 0, kind: input, shape index: {}, may-alias: {0,1}]
  %s1 = inlined_call_operand.vmem [shape: f32[2,16,128], index: 1, kind: input, shape index: {}, may-alias: {0,1}]
  %s2 = inlined_call_operand.vmem [shape: f32[1,128], index: 2, kind: input, shape index: {}]
  %s3 = inlined_call_operand.vmem [shape: f32[1,128], index: 3, kind: input, shape index: {}]
  %s4 = inlined_call_operand.vmem [shape: bf16[128,512], index: 4, kind: input, shape index: {}]
  %s5 = inlined_call_operand.vmem [shape: bf16[128,128], index: 5, kind: input, shape index: {}]
  %s6 = inlined_call_operand.vmem [shape: bf16[512,128], index: 6, kind: input, shape index: {}]
  %s7 = inlined_call_operand.hbm [shape: f32[2,16,128], index: 7, kind: output, shape index: {}]
  %s8 = sld [smem:[#allocation0]]
  $region69: #{_cmix_pallas.1} parent=0
    _
  %s10 = ssub.s32 1, %s8
  %s11 = scalar_select 0, %s10, %s8
  $region1: #{_cmix_pallas.1} parent=0
    #allocation5 [shape = 'u8[16384]{0}', space=vmem, size = 0x4000, scoped, tag = 'output window, operand 0']
    #allocation6 [shape = 's32[2]{0}', space=sflag, size = 0x8, scoped, tag = 'scoped memory for _cmix_pallas.1']
    %12 = vsyncpa [#allocation6], 0
    %s13 = scalar_lea.sflag [#allocation6], 1
    %14 = vsyncpa %s13, 0
    loop: start=0, step=1, limit=4
    $region2: #{_cmix_pallas.1} parent=1 // loop_pre_header
      _
    $region3: #{_cmix_pallas.1} parent=1 // loop_header
      %s16 = sphi 0, %s20
      %p17 = scmp.ge.s32.totalorder %s16, 4
      %s23 = sphi 0, %s42
      %s24 = sphi 0, %s38
      %s25 = sphi 0, %s34
      %s26 = sphi 0, %s23
      %s27 = sphi 0, %s24
      %s28 = sphi 0, %s25
      %s29 = sphi 0, %s26
      %s30 = sphi 0, %s27
      %s31 = sphi 0, %s28
      %s47 = sphi 0, %s49
      %s50 = sphi 0, %s47
      %s51 = sphi 0, %s50
      %s67 = sphi 0, %s51
      %s83 = sphi 0, %s85
      %s86 = sphi 0, %s83
      %s87 = sphi 0, %s86
      %s103 = sphi 0, %s87
      %s107 = sphi 0, %s107
      %s109 = sphi 0, %s107
      %s110 = sphi 0, %s109
      %s124 = sphi 0, %s110
      %s128 = sphi 0, %s128
      %s130 = sphi 0, %s128
      %s131 = sphi 0, %s130
      %s145 = sphi 0, %s131
      %s151 = sphi 0, %s153
      %s154 = sphi 0, %s151
      %s155 = sphi 0, %s154
      %s171 = sphi 0, %s155
      %s175 = sphi 0, %s175
      %s177 = sphi 0, %s175
      %s178 = sphi 0, %s177
      %s192 = sphi 0, %s178
      %s198 = sphi 0, %s200
      %s201 = sphi 0, %s198
      %s202 = sphi 0, %s201
      %s218 = sphi 0, %s202
      %s226 = sphi 0, %s228
      %s229 = sphi 0, %s226
      %s230 = sphi 0, %s229
      %s246 = sphi 0, %s230
    $region4: #{_cmix_pallas.1} parent=1 // loop_header_branch
      %19 = sbr.rel (%p17) target = $region8
    $region5: #{_cmix_pallas.1} parent=1 // loop_body
      %s21 = ssub.s32 %s16, 1
      %s22 = ssub.s32 %s16, 2
      %s32 = sadd.s32 1, %s25
      %p33 = scmp.ge.s32.totalorder %s32, 1
      %s34 = scalar_select %p33, 0, %s32
      %s35 = sadd.s32 1, %s24
      %s36 = scalar_select %p33, %s35, %s24
      %p37 = scmp.ge.s32.totalorder %s36, 1
      %s38 = scalar_select %p37, 0, %s36
      %s39 = sadd.s32 1, %s23
      %s40 = scalar_select %p37, %s39, %s23
      %p41 = scmp.ge.s32.totalorder %s40, 2
      %s42 = scalar_select %p41, 0, %s40
      %s43 = ssub.s32 %s23, %s42
      %s44 = ssub.s32 %s24, %s38
      %s45 = sor.u32 %s43, %s44
      %p46 = scmp.eq.s32.totalorder %s45, 0
      %s48 = sadd.s32 %s47, 1
      %s49 = scalar_select %p46, %s47, %s48
      %p52 = pneg %p46
      %p53 = scmp.eq.s32.totalorder %s16, 1
      %p54 = por %p52, %p53
      %p55 = scmp.ne.s32.totalorder %s47, %s50
      %p56 = scmp.eq.s32.totalorder %s16, 0
      %p57 = por %p55, %p56
      %p58 = scmp.ne.s32.totalorder %s47, %s50
      %p59 = scmp.eq.s32.totalorder %s21, 1
      %p60 = por %p58, %p59
      %p61 = scmp.ne.s32.totalorder %s50, %s51
      %p62 = scmp.eq.s32.totalorder %s21, 0
      %p63 = por %p61, %p62
      %p64 = scmp.ne.s32.totalorder %s50, %s51
      %p65 = scmp.eq.s32.totalorder %s22, 1
      %p66 = por %p64, %p65
      %p68 = scmp.ne.s32.totalorder %s51, %s67
      %p69 = scmp.eq.s32.totalorder %s22, 0
      %p70 = por %p68, %p69
      %s71 = smul.u32 %s24, 2
      %s72 = ssub.s32 %s71, 1
      %p73 = scmp.gt.s32.totalorder %s72, 0
      %s74 = scalar_select %p73, %s72, 0
      %s75 = smul.u32 %s38, 2
      %s76 = ssub.s32 %s75, 1
      %p77 = scmp.gt.s32.totalorder %s76, 0
      %s78 = scalar_select %p77, %s76, 0
      %s79 = ssub.s32 %s23, %s42
      %s80 = ssub.s32 %s74, %s78
      %s81 = sor.u32 %s79, %s80
      %p82 = scmp.eq.s32.totalorder %s81, 0
      %s84 = sadd.s32 %s83, 1
      %s85 = scalar_select %p82, %s83, %s84
      %p88 = pneg %p82
      %p89 = scmp.eq.s32.totalorder %s16, 1
      %p90 = por %p88, %p89
      %p91 = scmp.ne.s32.totalorder %s83, %s86
      %p92 = scmp.eq.s32.totalorder %s16, 0
      %p93 = por %p91, %p92
      %p94 = scmp.ne.s32.totalorder %s83, %s86
      %p95 = scmp.eq.s32.totalorder %s21, 1
      %p96 = por %p94, %p95
      %p97 = scmp.ne.s32.totalorder %s86, %s87
      %p98 = scmp.eq.s32.totalorder %s21, 0
      %p99 = por %p97, %p98
      %p100 = scmp.ne.s32.totalorder %s86, %s87
      %p101 = scmp.eq.s32.totalorder %s22, 1
      %p102 = por %p100, %p101
      %p104 = scmp.ne.s32.totalorder %s87, %s103
      %p105 = scmp.eq.s32.totalorder %s22, 0
      %p106 = por %p104, %p105
      %s108 = sadd.s32 %s107, 1
      %p111 = scmp.eq.s32.totalorder %s16, 1
      %p112 = scmp.ne.s32.totalorder %s107, %s109
      %p113 = scmp.eq.s32.totalorder %s16, 0
      %p114 = por %p112, %p113
      %p115 = scmp.ne.s32.totalorder %s107, %s109
      %p116 = scmp.eq.s32.totalorder %s21, 1
      %p117 = por %p115, %p116
      %p118 = scmp.ne.s32.totalorder %s109, %s110
      %p119 = scmp.eq.s32.totalorder %s21, 0
      %p120 = por %p118, %p119
      %p121 = scmp.ne.s32.totalorder %s109, %s110
      %p122 = scmp.eq.s32.totalorder %s22, 1
      %p123 = por %p121, %p122
      %p125 = scmp.ne.s32.totalorder %s110, %s124
      %p126 = scmp.eq.s32.totalorder %s22, 0
      %p127 = por %p125, %p126
      %s129 = sadd.s32 %s128, 1
      %p132 = scmp.eq.s32.totalorder %s16, 1
      %p133 = scmp.ne.s32.totalorder %s128, %s130
      %p134 = scmp.eq.s32.totalorder %s16, 0
      %p135 = por %p133, %p134
      %p136 = scmp.ne.s32.totalorder %s128, %s130
      %p137 = scmp.eq.s32.totalorder %s21, 1
      %p138 = por %p136, %p137
      %p139 = scmp.ne.s32.totalorder %s130, %s131
      %p140 = scmp.eq.s32.totalorder %s21, 0
      %p141 = por %p139, %p140
      %p142 = scmp.ne.s32.totalorder %s130, %s131
      %p143 = scmp.eq.s32.totalorder %s22, 1
      %p144 = por %p142, %p143
      %p146 = scmp.ne.s32.totalorder %s131, %s145
      %p147 = scmp.eq.s32.totalorder %s22, 0
      %p148 = por %p146, %p147
      %s149 = ssub.s32 %s25, %s34
      %p150 = scmp.eq.s32.totalorder %s149, 0
      %s152 = sadd.s32 %s151, 1
      %s153 = scalar_select %p150, %s151, %s152
      %p156 = pneg %p150
      %p157 = scmp.eq.s32.totalorder %s16, 1
      %p158 = por %p156, %p157
      %p159 = scmp.ne.s32.totalorder %s151, %s154
      %p160 = scmp.eq.s32.totalorder %s16, 0
      %p161 = por %p159, %p160
      %p162 = scmp.ne.s32.totalorder %s151, %s154
      %p163 = scmp.eq.s32.totalorder %s21, 1
      %p164 = por %p162, %p163
      %p165 = scmp.ne.s32.totalorder %s154, %s155
      %p166 = scmp.eq.s32.totalorder %s21, 0
      %p167 = por %p165, %p166
      %p168 = scmp.ne.s32.totalorder %s154, %s155
      %p169 = scmp.eq.s32.totalorder %s22, 1
      %p170 = por %p168, %p169
      %p172 = scmp.ne.s32.totalorder %s155, %s171
      %p173 = scmp.eq.s32.totalorder %s22, 0
      %p174 = por %p172, %p173
      %s176 = sadd.s32 %s175, 1
      %p179 = scmp.eq.s32.totalorder %s16, 1
      %p180 = scmp.ne.s32.totalorder %s175, %s177
      %p181 = scmp.eq.s32.totalorder %s16, 0
      %p182 = por %p180, %p181
      %p183 = scmp.ne.s32.totalorder %s175, %s177
      %p184 = scmp.eq.s32.totalorder %s21, 1
      %p185 = por %p183, %p184
      %p186 = scmp.ne.s32.totalorder %s177, %s178
      %p187 = scmp.eq.s32.totalorder %s21, 0
      %p188 = por %p186, %p187
      %p189 = scmp.ne.s32.totalorder %s177, %s178
      %p190 = scmp.eq.s32.totalorder %s22, 1
      %p191 = por %p189, %p190
      %p193 = scmp.ne.s32.totalorder %s178, %s192
      %p194 = scmp.eq.s32.totalorder %s22, 0
      %p195 = por %p193, %p194
      %s196 = ssub.s32 %s25, %s34
      %p197 = scmp.eq.s32.totalorder %s196, 0
      %s199 = sadd.s32 %s198, 1
      %s200 = scalar_select %p197, %s198, %s199
      %p203 = pneg %p197
      %p204 = scmp.eq.s32.totalorder %s16, 1
      %p205 = por %p203, %p204
      %p206 = scmp.ne.s32.totalorder %s198, %s201
      %p207 = scmp.eq.s32.totalorder %s16, 0
      %p208 = por %p206, %p207
      %p209 = scmp.ne.s32.totalorder %s198, %s201
      %p210 = scmp.eq.s32.totalorder %s21, 1
      %p211 = por %p209, %p210
      %p212 = scmp.ne.s32.totalorder %s201, %s202
      %p213 = scmp.eq.s32.totalorder %s21, 0
      %p214 = por %p212, %p213
      %p215 = scmp.ne.s32.totalorder %s201, %s202
      %p216 = scmp.eq.s32.totalorder %s22, 1
      %p217 = por %p215, %p216
      %p219 = scmp.ne.s32.totalorder %s202, %s218
      %p220 = scmp.eq.s32.totalorder %s22, 0
      %p221 = por %p219, %p220
      %s222 = ssub.s32 %s23, %s42
      %s223 = ssub.s32 %s24, %s38
      %s224 = sor.u32 %s222, %s223
      %p225 = scmp.eq.s32.totalorder %s224, 0
      %s227 = sadd.s32 %s226, 1
      %s228 = scalar_select %p225, %s226, %s227
      %p231 = pneg %p225
      %p232 = scmp.eq.s32.totalorder %s16, 1
      %p233 = por %p231, %p232
      %p234 = scmp.ne.s32.totalorder %s226, %s229
      %p235 = scmp.eq.s32.totalorder %s16, 0
      %p236 = por %p234, %p235
      %p237 = scmp.ne.s32.totalorder %s226, %s229
      %p238 = scmp.eq.s32.totalorder %s21, 1
      %p239 = por %p237, %p238
      %p240 = scmp.ne.s32.totalorder %s229, %s230
      %p241 = scmp.eq.s32.totalorder %s21, 0
      %p242 = por %p240, %p241
      %p243 = scmp.ne.s32.totalorder %s229, %s230
      %p244 = scmp.eq.s32.totalorder %s22, 1
      %p245 = por %p243, %p244
      %p247 = scmp.ne.s32.totalorder %s230, %s246
      %p248 = scmp.eq.s32.totalorder %s22, 0
      %p249 = por %p247, %p248
      %p250 = scmp.le.s32.totalorder 1, %s16
      %p251 = scmp.lt.s32.totalorder %s16, 3
      %p252 = pnand %p250, %p251
      %p253 = pneg %p252
      // Predicated region
      $region9: #{_cmix_pallas.1} parent=5 // pred_check
        _
      $region10: #{_cmix_pallas.1} parent=5 // pred_check_branch
        %255 = sbr.rel (%p252) target = $region12
      $region11: #{_cmix_pallas.1} parent=5 // pred_region
        %s256 = ssub.s32 %s16, 1
        // Predicated region
        $region13: #{_cmix_pallas.1} parent=11 // pred_check
          %p257 = pneg %p120
        $region14: #{_cmix_pallas.1} parent=11 // pred_check_branch
          %259 = sbr.rel (%p257) target = $region16
        $region15: #{_cmix_pallas.1} parent=11 // pred_region
          _
        $region16: #{_cmix_pallas.1} parent=11 // pred_fallthru
          _
        // Predicated region
        $region17: #{_cmix_pallas.1} parent=11 // pred_check
          %p260 = pneg %p141
        $region18: #{_cmix_pallas.1} parent=11 // pred_check_branch
          %262 = sbr.rel (%p260) target = $region20
        $region19: #{_cmix_pallas.1} parent=11 // pred_region
          _
        $region20: #{_cmix_pallas.1} parent=11 // pred_fallthru
          _
        // Predicated region
        $region21: #{_cmix_pallas.1} parent=11 // pred_check
          %p263 = pneg %p167
        $region22: #{_cmix_pallas.1} parent=11 // pred_check_branch
          %265 = sbr.rel (%p263) target = $region24
        $region23: #{_cmix_pallas.1} parent=11 // pred_region
          %s266 = smul.u32 4, %s28
          %p267 = scmp.lt.s32.totalorder %s266, 3
          %s268 = scalar_select %p267, %s266, 3
          %s269 = smul.addr %s268, 4
          %s270 = scalar_lea.vmem %s4, %s269
          %s271 = smul.u32 4, %s28
        $region24: #{_cmix_pallas.1} parent=11 // pred_fallthru
          _
        // Predicated region
        $region25: #{_cmix_pallas.1} parent=11 // pred_check
          %p272 = pneg %p188
        $region26: #{_cmix_pallas.1} parent=11 // pred_check_branch
          %274 = sbr.rel (%p272) target = $region28
        $region27: #{_cmix_pallas.1} parent=11 // pred_region
          _
        $region28: #{_cmix_pallas.1} parent=11 // pred_fallthru
          _
        // Predicated region
        $region29: #{_cmix_pallas.1} parent=11 // pred_check
          %p275 = pneg %p214
        $region30: #{_cmix_pallas.1} parent=11 // pred_check_branch
          %277 = sbr.rel (%p275) target = $region32
        $region31: #{_cmix_pallas.1} parent=11 // pred_region
          %s278 = smul.u32 64, %s28
          %p279 = scmp.lt.s32.totalorder %s278, 63
          %s280 = scalar_select %p279, %s278, 63
          %s281 = smul.addr %s280, 4
          %s282 = scalar_lea.vmem %s6, %s281
          %s283 = smul.u32 64, %s28
        $region32: #{_cmix_pallas.1} parent=11 // pred_fallthru
          _
      $region12: #{_cmix_pallas.1} parent=5 // pred_fallthru
        _
      %p284 = scmp.lt.s32.totalorder %s16, 2
      // Predicated region
      $region33: #{_cmix_pallas.1} parent=5 // pred_check
        %p285 = pneg %p284
      $region34: #{_cmix_pallas.1} parent=5 // pred_check_branch
        %287 = sbr.rel (%p285) target = $region36
      $region35: #{_cmix_pallas.1} parent=5 // pred_region
        // Predicated region
        $region37: #{_cmix_pallas.1} parent=35 // pred_check
          %p288 = pneg %p57
        $region38: #{_cmix_pallas.1} parent=35 // pred_check_branch
          %290 = sbr.rel (%p288) target = $region40
        $region39: #{_cmix_pallas.1} parent=35 // pred_region
          %s291 = smul.u32 2, %s24
          %p292 = scmp.lt.s32.totalorder %s23, 1
          %s293 = scalar_select %p292, %s23, 1
          %p294 = scmp.lt.s32.totalorder %s291, 1
          %s295 = scalar_select %p294, %s291, 1
          %s296 = smul.addr %s293, 2
          %s297 = sadd.s32 %s295, %s296
          %s298 = smul.addr %s297, 8
          %s299 = scalar_lea.vmem %s0, %s298
          %s300 = smul.u32 2, %s24
        $region40: #{_cmix_pallas.1} parent=35 // pred_fallthru
          _
        // Predicated region
        $region41: #{_cmix_pallas.1} parent=35 // pred_check
          %p301 = pneg %p93
        $region42: #{_cmix_pallas.1} parent=35 // pred_check_branch
          %303 = sbr.rel (%p301) target = $region44
        $region43: #{_cmix_pallas.1} parent=35 // pred_region
          %s304 = smul.u32 %s24, 2
          %s305 = ssub.s32 %s304, 1
          %p306 = scmp.gt.s32.totalorder %s305, 0
          %s307 = scalar_select %p306, %s305, 0
          %p308 = scmp.lt.s32.totalorder %s23, 1
          %s309 = scalar_select %p308, %s23, 1
          %p310 = scmp.lt.s32.totalorder %s307, 1
          %s311 = scalar_select %p310, %s307, 1
          %s312 = smul.addr %s309, 2
          %s313 = sadd.s32 %s311, %s312
          %s314 = smul.addr %s313, 8
          %s315 = scalar_lea.vmem %s1, %s314
          %s316 = smul.u32 %s24, 2
          %s317 = ssub.s32 %s316, 1
          %p318 = scmp.gt.s32.totalorder %s317, 0
          %s319 = scalar_select %p318, %s317, 0
        $region44: #{_cmix_pallas.1} parent=35 // pred_fallthru
          _
      $region36: #{_cmix_pallas.1} parent=5 // pred_fallthru
        _
      %p320 = scmp.le.s32.totalorder 1, %s16
      %p321 = scmp.lt.s32.totalorder %s16, 3
      %p322 = pnand %p320, %p321
      %p323 = pneg %p322
      // Predicated region
      $region45: #{_cmix_pallas.1} parent=5 // pred_check
        _
      $region46: #{_cmix_pallas.1} parent=5 // pred_check_branch
        %325 = sbr.rel (%p322) target = $region48
      $region47: #{_cmix_pallas.1} parent=5 // pred_region
        %s326 = ssub.s32 %s16, 1
        %s327 = smul.u32 2, %s27
        %p328 = scmp.lt.s32.totalorder %s26, 1
        %s329 = scalar_select %p328, %s26, 1
        %p330 = scmp.lt.s32.totalorder %s327, 1
        %s331 = scalar_select %p330, %s327, 1
        %s332 = smul.addr %s329, 2
        %s333 = sadd.s32 %s331, %s332
        %s334 = smul.addr %s333, 8
        %s335 = scalar_lea.vmem %s0, %s334
        %p336 = pneg %p63
        %p337 = pneg %p60
        %s338 = smul.u32 %s27, 2
        %s339 = ssub.s32 %s338, 1
        %p340 = scmp.gt.s32.totalorder %s339, 0
        %s341 = scalar_select %p340, %s339, 0
        %p342 = scmp.lt.s32.totalorder %s26, 1
        %s343 = scalar_select %p342, %s26, 1
        %p344 = scmp.lt.s32.totalorder %s341, 1
        %s345 = scalar_select %p344, %s341, 1
        %s346 = smul.addr %s343, 2
        %s347 = sadd.s32 %s345, %s346
        %s348 = smul.addr %s347, 8
        %s349 = scalar_lea.vmem %s1, %s348
        %p350 = pneg %p99
        %p351 = pneg %p96
        %p352 = pneg %p120
        %p353 = pneg %p117
        %p354 = pneg %p141
        %p355 = pneg %p138
        %s356 = smul.u32 4, %s28
        %p357 = scmp.lt.s32.totalorder %s356, 3
        %s358 = scalar_select %p357, %s356, 3
        %s359 = smul.addr %s358, 4
        %s360 = scalar_lea.vmem %s4, %s359
        %p361 = pneg %p167
        %p362 = pneg %p164
        %p363 = pneg %p188
        %p364 = pneg %p185
        %s365 = smul.u32 64, %s28
        %p366 = scmp.lt.s32.totalorder %s365, 63
        %s367 = scalar_select %p366, %s365, 63
        %s368 = smul.addr %s367, 4
        %s369 = scalar_lea.vmem %s6, %s368
        %p370 = pneg %p214
        %p371 = pneg %p211
        %p372 = pneg %p242
        %p373 = pneg %p239
        %s374 = sand.u32 %s229, 1
        %s375 = scalar_lea.sflag [#allocation6], %s374
        %s376 = sand.u32 %s229, 1
        %s377 = smul.addr %s376, 16
        %s378 = scalar_lea.vmem [#allocation5], %s377
        %s379 = smul.u32 2, %s27
        %p380 = scmp.lt.s32.totalorder %s26, 1
        %s381 = scalar_select %p380, %s26, 1
        %p382 = scmp.lt.s32.totalorder %s379, 1
        %s383 = scalar_select %p382, %s379, 1
        %s384 = smul.addr %s381, 2
        %s385 = sadd.s32 %s383, %s384
        %s386 = smul.addr %s385, 8
        %s387 = scalar_lea.vmem %s0, %s386
        %s388 = smul.u32 2, %s27
        %s389 = smul.u32 %s27, 2
        %s390 = ssub.s32 %s389, 1
        %p391 = scmp.gt.s32.totalorder %s390, 0
        %s392 = scalar_select %p391, %s390, 0
        %p393 = scmp.lt.s32.totalorder %s26, 1
        %s394 = scalar_select %p393, %s26, 1
        %p395 = scmp.lt.s32.totalorder %s392, 1
        %s396 = scalar_select %p395, %s392, 1
        %s397 = smul.addr %s394, 2
        %s398 = sadd.s32 %s396, %s397
        %s399 = smul.addr %s398, 8
        %s400 = scalar_lea.vmem %s1, %s399
        %s401 = smul.u32 %s27, 2
        %s402 = ssub.s32 %s401, 1
        %p403 = scmp.gt.s32.totalorder %s402, 0
        %s404 = scalar_select %p403, %s402, 0
        %s405 = smul.u32 4, %s28
        %p406 = scmp.lt.s32.totalorder %s405, 3
        %s407 = scalar_select %p406, %s405, 3
        %s408 = smul.addr %s407, 4
        %s409 = scalar_lea.vmem %s4, %s408
        %s410 = smul.u32 4, %s28
        %s411 = smul.u32 64, %s28
        %p412 = scmp.lt.s32.totalorder %s411, 63
        %s413 = scalar_select %p412, %s411, 63
        %s414 = smul.addr %s413, 4
        %s415 = scalar_lea.vmem %s6, %s414
        %s416 = smul.u32 64, %s28
        %s417 = smul.u32 2, %s27
        %p419 = scmp.eq.s32.totalorder %s28, 0
        // Predicated region
        $region49: #{_cmix_pallas.1} parent=47 // pred_check
          %p420 = pneg %p419
        $region50: #{_cmix_pallas.1} parent=47 // pred_check_branch
          %422 = sbr.rel (%p420) target = $region52
        $region51: #{_cmix_pallas.1} parent=47 // pred_region
          %v423 = vld [vmem:[%s387] sm:$0xff]
          %v424 = vld [vmem:[%s387 + $0x8] sm:$0xff]
          %v425 = vld [vmem:[%s2] sm:$0x1]
          %v426 = vld [vmem:[%s3] sm:$0x1]
          %v427 = vrot.slane %v423, 7
          %v428 = vrot.slane %v424, 7
          %v429 = vlaneseq
          %v430 = vshrl.u32 %v429, 7
          %vm431 = vcmp.lt.s32.totalorder %v430, 1
          %v432 = vsel %vm431, %v427, %v428
          %v433 = vsel %vm431, %v428, %v427
          %v434 = vld [vmem:[%s400] sm:$0xff]
          %p435 = scmp.gt.s32.totalorder %s27, 0
          %s436 = scalar_select %p435, 1, 0
          %s437 = scvt.s32.f32 %s436
          %v438 = vstv %s437
          %v439 = vmul.f32 %v434, %v438
          %v440 = vadd.s32 %v430, 8
          %vm441 = vcmp.eq.s32.totalorder %v430, 0
          %vm442 = vcmp.eq.s32.totalorder %v440, 0
          %v443 = vlaneseq
          %v444 = vshrl.u32 %v443, 7
          %v445 = vsub.s32 7, %v444
          %v446 = vrot.slane %v439, %v445
          %v447 = vsel %vm441, %v446, %v433
          %v448 = vsel %vm442, %v446, %v432
          %v449 = vsub.f32 %v447, %v423
          %v450 = vsub.f32 %v448, %v424
          %v452 = vlaneseq
          %v453 = vshrl.u32 %v452, 7
          %v454 = vsub.s32 0, %v453
          %v455 = vrot.slane %v425, %v454
          %v457 = vmul.f32 %v449, %v455
          %v458 = vmul.f32 %v450, %v455
          %v459 = vadd.f32 %v423, %v457
          %v460 = vadd.f32 %v424, %v458
          %v461 = vpack.c.bf16 %v460, %v459
          %v463 = vlaneseq
          %v464 = vshrl.u32 %v463, 7
          %v465 = vsub.s32 0, %v464
          %v466 = vrot.slane %v426, %v465
          %v468 = vmul.f32 %v449, %v466
          %v469 = vmul.f32 %v450, %v466
          %v470 = vadd.f32 %v423, %v468
          %v471 = vadd.f32 %v424, %v469
          %v472 = vpack.c.bf16 %v471, %v470
          %473 = vst [vmem:[#allocation2] sm:$0xff] %v461
          %474 = vst [vmem:[#allocation3] sm:$0xff] 0.0
          %475 = vst [vmem:[#allocation3 + $0x8] sm:$0xff] 0.0
          %v476 = vld [vmem:[%s5] sm:$0xf]
          %v477 = vld [vmem:[%s5 + $0x4] sm:$0xf]
          %v478 = vld [vmem:[%s5 + $0x8] sm:$0xf]
          %v479 = vld [vmem:[%s5 + $0xc] sm:$0xf]
          %v480 = vld [vmem:[%s5 + $0x10] sm:$0xf]
          %v481 = vld [vmem:[%s5 + $0x14] sm:$0xf]
          %v482 = vld [vmem:[%s5 + $0x18] sm:$0xf]
          %v483 = vld [vmem:[%s5 + $0x1c] sm:$0xf]
          %v484 = vld [vmem:[%s5 + $0x20] sm:$0xf]
          %v485 = vld [vmem:[%s5 + $0x24] sm:$0xf]
          %v486 = vld [vmem:[%s5 + $0x28] sm:$0xf]
          %v487 = vld [vmem:[%s5 + $0x2c] sm:$0xf]
          %v488 = vld [vmem:[%s5 + $0x30] sm:$0xf]
          %v489 = vld [vmem:[%s5 + $0x34] sm:$0xf]
          %v490 = vld [vmem:[%s5 + $0x38] sm:$0xf]
          %v491 = vld [vmem:[%s5 + $0x3c] sm:$0xf]
          %v508 = vunpack.c.l.b16 %v476
          %v509 = vunpack.c.l.b16 %v477
          %v510 = vunpack.c.l.b16 %v478
          %v511 = vunpack.c.l.b16 %v479
          %v512 = vunpack.c.l.b16 %v480
          %v513 = vunpack.c.l.b16 %v481
          %v514 = vunpack.c.l.b16 %v482
          %v515 = vunpack.c.l.b16 %v483
          %v516 = vunpack.c.l.b16 %v484
          %v517 = vunpack.c.l.b16 %v485
          %v518 = vunpack.c.l.b16 %v486
          %v519 = vunpack.c.l.b16 %v487
          %v520 = vunpack.c.l.b16 %v488
          %v521 = vunpack.c.l.b16 %v489
          %v522 = vunpack.c.l.b16 %v490
          %v523 = vunpack.c.l.b16 %v491
          %v524 = vpack.c.b16 %v509, %v508
          %v525 = vpack.c.b16 %v511, %v510
          %v526 = vpack.c.b16 %v513, %v512
          %v527 = vpack.c.b16 %v515, %v514
          %v528 = vpack.c.b16 %v517, %v516
          %v529 = vpack.c.b16 %v519, %v518
          %v530 = vpack.c.b16 %v521, %v520
          %v531 = vpack.c.b16 %v523, %v522
          %540 = vmatprep.subr.bf16.mxu0 0
          %541 = vmatpush1.bf16.msra.mxu0 %v524
          %542 = vmatprep.subr.bf16.mxu0 0
          %543 = vmatpush1.bf16.msra.mxu0 %v525
          %544 = vmatprep.subr.bf16.mxu0 0
          %545 = vmatpush1.bf16.msra.mxu0 %v526
          %546 = vmatprep.subr.bf16.mxu0 0
          %547 = vmatpush1.bf16.msra.mxu0 %v527
          %548 = vmatprep.subr.bf16.mxu0 0
          %549 = vmatpush1.bf16.msra.mxu0 %v528
          %550 = vmatprep.subr.bf16.mxu0 0
          %551 = vmatpush1.bf16.msra.mxu0 %v529
          %552 = vmatprep.subr.bf16.mxu0 0
          %553 = vmatpush1.bf16.msra.mxu0 %v530
          %554 = vmatprep.subr.bf16.mxu0 0
          %555 = vmatpush1.bf16.msra.mxu0 %v531
          %556 = vmatprep.subr.bf16.mxu0 0
          %557 = vmatpush1.bf16.msra.mxu0 0
          %558 = vmatprep.subr.bf16.mxu0 0
          %559 = vmatpush1.bf16.msra.mxu0 0
          %560 = vmatprep.subr.bf16.mxu0 0
          %561 = vmatpush1.bf16.msra.mxu0 0
          %562 = vmatprep.subr.bf16.mxu0 0
          %563 = vmatpush1.bf16.msra.mxu0 0
          %564 = vmatprep.subr.bf16.mxu0 0
          %565 = vmatpush1.bf16.msra.mxu0 0
          %566 = vmatprep.subr.bf16.mxu0 0
          %567 = vmatpush1.bf16.msra.mxu0 0
          %568 = vmatprep.subr.bf16.mxu0 0
          %569 = vmatpush1.bf16.msra.mxu0 0
          %570 = vmatprep.subr.bf16.mxu0 0
          %571 = vmatpush1.bf16.msra.mxu0 0
          %572 = vmatprep.mubr.bf16.mxu0 0
          %573 = vmatmul.mubr.bf16.gmra.mrb[0].mxu0 %v472
          %v574 = vpop.f32.mrb[0].mxu0
          %v575 = vadd.f32 0.0, %v574
          %v576 = vpop.f32.mrb[0].mxu0
          %v577 = vpop.f32.mrb[0].mxu0
          %v578 = vadd.f32 0.0, %v577
          %v579 = vpop.f32.mrb[0].mxu0
          %580 = vdwg.mxu0
          %581 = vst [vmem:[#allocation4] sm:$0xff] %v575
          %582 = vst [vmem:[#allocation4 + $0x8] sm:$0xff] %v578
        $region52: #{_cmix_pallas.1} parent=47 // pred_fallthru
          _
        %v583 = vld [vmem:[#allocation2] sm:$0xff]
        %v584 = vld [vmem:[%s409] sm:$0xff]
        %v585 = vld [vmem:[%s409 + $0x8] sm:$0xff]
        %v586 = vld [vmem:[%s409 + $0x10] sm:$0xff]
        %v587 = vld [vmem:[%s409 + $0x18] sm:$0xff]
        %v588 = vld [vmem:[%s409 + $0x20] sm:$0xff]
        %v589 = vld [vmem:[%s409 + $0x28] sm:$0xff]
        %v590 = vld [vmem:[%s409 + $0x30] sm:$0xff]
        %v591 = vld [vmem:[%s409 + $0x38] sm:$0xff]
        %v592 = vld [vmem:[%s409 + $0x40] sm:$0xff]
        %v593 = vld [vmem:[%s409 + $0x48] sm:$0xff]
        %v594 = vld [vmem:[%s409 + $0x50] sm:$0xff]
        %v595 = vld [vmem:[%s409 + $0x58] sm:$0xff]
        %v596 = vld [vmem:[%s409 + $0x60] sm:$0xff]
        %v597 = vld [vmem:[%s409 + $0x68] sm:$0xff]
        %v598 = vld [vmem:[%s409 + $0x70] sm:$0xff]
        %v599 = vld [vmem:[%s409 + $0x78] sm:$0xff]
        %v600 = vld [vmem:[%s409 + $0x80] sm:$0xff]
        %v601 = vld [vmem:[%s409 + $0x88] sm:$0xff]
        %v602 = vld [vmem:[%s409 + $0x90] sm:$0xff]
        %v603 = vld [vmem:[%s409 + $0x98] sm:$0xff]
        %v604 = vld [vmem:[%s409 + $0xa0] sm:$0xff]
        %v605 = vld [vmem:[%s409 + $0xa8] sm:$0xff]
        %v606 = vld [vmem:[%s409 + $0xb0] sm:$0xff]
        %v607 = vld [vmem:[%s409 + $0xb8] sm:$0xff]
        %v608 = vld [vmem:[%s409 + $0xc0] sm:$0xff]
        %v609 = vld [vmem:[%s409 + $0xc8] sm:$0xff]
        %v610 = vld [vmem:[%s409 + $0xd0] sm:$0xff]
        %v611 = vld [vmem:[%s409 + $0xd8] sm:$0xff]
        %v612 = vld [vmem:[%s409 + $0xe0] sm:$0xff]
        %v613 = vld [vmem:[%s409 + $0xe8] sm:$0xff]
        %v614 = vld [vmem:[%s409 + $0xf0] sm:$0xff]
        %v615 = vld [vmem:[%s409 + $0xf8] sm:$0xff]
        %v648 = vunpack.c.l.b16 %v584
        %v649 = vunpack.c.h.b16 %v584
        %v650 = vunpack.c.l.b16 %v585
        %v651 = vunpack.c.h.b16 %v585
        %v652 = vunpack.c.l.b16 %v586
        %v653 = vunpack.c.h.b16 %v586
        %v654 = vunpack.c.l.b16 %v587
        %v655 = vunpack.c.h.b16 %v587
        %v656 = vunpack.c.l.b16 %v588
        %v657 = vunpack.c.h.b16 %v588
        %v658 = vunpack.c.l.b16 %v589
        %v659 = vunpack.c.h.b16 %v589
        %v660 = vunpack.c.l.b16 %v590
        %v661 = vunpack.c.h.b16 %v590
        %v662 = vunpack.c.l.b16 %v591
        %v663 = vunpack.c.h.b16 %v591
        %v664 = vunpack.c.l.b16 %v592
        %v665 = vunpack.c.h.b16 %v592
        %v666 = vunpack.c.l.b16 %v593
        %v667 = vunpack.c.h.b16 %v593
        %v668 = vunpack.c.l.b16 %v594
        %v669 = vunpack.c.h.b16 %v594
        %v670 = vunpack.c.l.b16 %v595
        %v671 = vunpack.c.h.b16 %v595
        %v672 = vunpack.c.l.b16 %v596
        %v673 = vunpack.c.h.b16 %v596
        %v674 = vunpack.c.l.b16 %v597
        %v675 = vunpack.c.h.b16 %v597
        %v676 = vunpack.c.l.b16 %v598
        %v677 = vunpack.c.h.b16 %v598
        %v678 = vunpack.c.l.b16 %v599
        %v679 = vunpack.c.h.b16 %v599
        %v680 = vunpack.c.l.b16 %v600
        %v681 = vunpack.c.h.b16 %v600
        %v682 = vunpack.c.l.b16 %v601
        %v683 = vunpack.c.h.b16 %v601
        %v684 = vunpack.c.l.b16 %v602
        %v685 = vunpack.c.h.b16 %v602
        %v686 = vunpack.c.l.b16 %v603
        %v687 = vunpack.c.h.b16 %v603
        %v688 = vunpack.c.l.b16 %v604
        %v689 = vunpack.c.h.b16 %v604
        %v690 = vunpack.c.l.b16 %v605
        %v691 = vunpack.c.h.b16 %v605
        %v692 = vunpack.c.l.b16 %v606
        %v693 = vunpack.c.h.b16 %v606
        %v694 = vunpack.c.l.b16 %v607
        %v695 = vunpack.c.h.b16 %v607
        %v696 = vunpack.c.l.b16 %v608
        %v697 = vunpack.c.h.b16 %v608
        %v698 = vunpack.c.l.b16 %v609
        %v699 = vunpack.c.h.b16 %v609
        %v700 = vunpack.c.l.b16 %v610
        %v701 = vunpack.c.h.b16 %v610
        %v702 = vunpack.c.l.b16 %v611
        %v703 = vunpack.c.h.b16 %v611
        %v704 = vunpack.c.l.b16 %v612
        %v705 = vunpack.c.h.b16 %v612
        %v706 = vunpack.c.l.b16 %v613
        %v707 = vunpack.c.h.b16 %v613
        %v708 = vunpack.c.l.b16 %v614
        %v709 = vunpack.c.h.b16 %v614
        %v710 = vunpack.c.l.b16 %v615
        %v711 = vunpack.c.h.b16 %v615
        %v712 = vpack.c.b16 %v652, %v648
        %v713 = vpack.c.b16 %v653, %v649
        %v714 = vpack.c.b16 %v654, %v650
        %v715 = vpack.c.b16 %v655, %v651
        %v716 = vpack.c.b16 %v660, %v656
        %v717 = vpack.c.b16 %v661, %v657
        %v718 = vpack.c.b16 %v662, %v658
        %v719 = vpack.c.b16 %v663, %v659
        %v720 = vpack.c.b16 %v668, %v664
        %v721 = vpack.c.b16 %v669, %v665
        %v722 = vpack.c.b16 %v670, %v666
        %v723 = vpack.c.b16 %v671, %v667
        %v724 = vpack.c.b16 %v676, %v672
        %v725 = vpack.c.b16 %v677, %v673
        %v726 = vpack.c.b16 %v678, %v674
        %v727 = vpack.c.b16 %v679, %v675
        %v728 = vpack.c.b16 %v684, %v680
        %v729 = vpack.c.b16 %v685, %v681
        %v730 = vpack.c.b16 %v686, %v682
        %v731 = vpack.c.b16 %v687, %v683
        %v732 = vpack.c.b16 %v692, %v688
        %v733 = vpack.c.b16 %v693, %v689
        %v734 = vpack.c.b16 %v694, %v690
        %v735 = vpack.c.b16 %v695, %v691
        %v736 = vpack.c.b16 %v700, %v696
        %v737 = vpack.c.b16 %v701, %v697
        %v738 = vpack.c.b16 %v702, %v698
        %v739 = vpack.c.b16 %v703, %v699
        %v740 = vpack.c.b16 %v708, %v704
        %v741 = vpack.c.b16 %v709, %v705
        %v742 = vpack.c.b16 %v710, %v706
        %v743 = vpack.c.b16 %v711, %v707
        %776 = vmatprep.subr.bf16.mxu0 %v713
        %777 = vmatpush1.bf16.msra.mxu0 %v712
        %778 = vmatprep.subr.bf16.mxu0 %v717
        %779 = vmatpush1.bf16.msra.mxu0 %v716
        %780 = vmatprep.subr.bf16.mxu0 %v721
        %781 = vmatpush1.bf16.msra.mxu0 %v720
        %782 = vmatprep.subr.bf16.mxu0 %v725
        %783 = vmatpush1.bf16.msra.mxu0 %v724
        %784 = vmatprep.subr.bf16.mxu0 %v729
        %785 = vmatpush1.bf16.msra.mxu0 %v728
        %786 = vmatprep.subr.bf16.mxu0 %v733
        %787 = vmatpush1.bf16.msra.mxu0 %v732
        %788 = vmatprep.subr.bf16.mxu0 %v737
        %789 = vmatpush1.bf16.msra.mxu0 %v736
        %790 = vmatprep.subr.bf16.mxu0 %v741
        %791 = vmatpush1.bf16.msra.mxu0 %v740
        %792 = vmatprep.subr.bf16.mxu0 0
        %793 = vmatpush1.bf16.msra.mxu0 0
        %794 = vmatprep.subr.bf16.mxu0 0
        %795 = vmatpush1.bf16.msra.mxu0 0
        %796 = vmatprep.subr.bf16.mxu0 0
        %797 = vmatpush1.bf16.msra.mxu0 0
        %798 = vmatprep.subr.bf16.mxu0 0
        %799 = vmatpush1.bf16.msra.mxu0 0
        %800 = vmatprep.subr.bf16.mxu0 0
        %801 = vmatpush1.bf16.msra.mxu0 0
        %802 = vmatprep.subr.bf16.mxu0 0
        %803 = vmatpush1.bf16.msra.mxu0 0
        %804 = vmatprep.subr.bf16.mxu0 0
        %805 = vmatpush1.bf16.msra.mxu0 0
        %806 = vmatprep.subr.bf16.mxu0 0
        %807 = vmatpush1.bf16.msra.mxu0 0
        %808 = vmatprep.mubr.bf16.mxu0 0
        %809 = vmatmul.mubr.bf16.gmra.mrb[0].mxu0 %v583
        %v810 = vpop.f32.mrb[0].mxu0
        %v811 = vadd.f32 0.0, %v810
        %v812 = vpop.f32.mrb[0].mxu0
        %v813 = vadd.f32 0.0, %v812
        %v814 = vpop.f32.mrb[0].mxu0
        %v815 = vadd.f32 0.0, %v814
        %v816 = vpop.f32.mrb[0].mxu0
        %v817 = vadd.f32 0.0, %v816
        %818 = vdwg.mxu0
        %819 = vmatprep.subr.bf16.mxu0 %v715
        %820 = vmatpush1.bf16.msra.mxu0 %v714
        %821 = vmatprep.subr.bf16.mxu0 %v719
        %822 = vmatpush1.bf16.msra.mxu0 %v718
        %823 = vmatprep.subr.bf16.mxu0 %v723
        %824 = vmatpush1.bf16.msra.mxu0 %v722
        %825 = vmatprep.subr.bf16.mxu0 %v727
        %826 = vmatpush1.bf16.msra.mxu0 %v726
        %827 = vmatprep.subr.bf16.mxu0 %v731
        %828 = vmatpush1.bf16.msra.mxu0 %v730
        %829 = vmatprep.subr.bf16.mxu0 %v735
        %830 = vmatpush1.bf16.msra.mxu0 %v734
        %831 = vmatprep.subr.bf16.mxu0 %v739
        %832 = vmatpush1.bf16.msra.mxu0 %v738
        %833 = vmatprep.subr.bf16.mxu0 %v743
        %834 = vmatpush1.bf16.msra.mxu0 %v742
        %835 = vmatprep.subr.bf16.mxu0 0
        %836 = vmatpush1.bf16.msra.mxu0 0
        %837 = vmatprep.subr.bf16.mxu0 0
        %838 = vmatpush1.bf16.msra.mxu0 0
        %839 = vmatprep.subr.bf16.mxu0 0
        %840 = vmatpush1.bf16.msra.mxu0 0
        %841 = vmatprep.subr.bf16.mxu0 0
        %842 = vmatpush1.bf16.msra.mxu0 0
        %843 = vmatprep.subr.bf16.mxu0 0
        %844 = vmatpush1.bf16.msra.mxu0 0
        %845 = vmatprep.subr.bf16.mxu0 0
        %846 = vmatpush1.bf16.msra.mxu0 0
        %847 = vmatprep.subr.bf16.mxu0 0
        %848 = vmatpush1.bf16.msra.mxu0 0
        %849 = vmatprep.subr.bf16.mxu0 0
        %850 = vmatpush1.bf16.msra.mxu0 0
        %851 = vmatprep.mubr.bf16.mxu0 0
        %852 = vmatmul.mubr.bf16.gmra.mrb[0].mxu0 %v583
        %v853 = vpop.f32.mrb[0].mxu0
        %v854 = vadd.f32 0.0, %v853
        %v855 = vpop.f32.mrb[0].mxu0
        %v856 = vadd.f32 0.0, %v855
        %v857 = vpop.f32.mrb[0].mxu0
        %v858 = vadd.f32 0.0, %v857
        %v859 = vpop.f32.mrb[0].mxu0
        %v860 = vadd.f32 0.0, %v859
        %861 = vdwg.mxu0
        %v862 = vmax.f32 %v811, 0.0
        %v863 = vmax.f32 %v813, 0.0
        %v864 = vmax.f32 %v854, 0.0
        %v865 = vmax.f32 %v856, 0.0
        %v866 = vmax.f32 %v815, 0.0
        %v867 = vmax.f32 %v817, 0.0
        %v868 = vmax.f32 %v858, 0.0
        %v869 = vmax.f32 %v860, 0.0
        %v870 = vmul.f32 %v862, %v862
        %v871 = vmul.f32 %v863, %v863
        %v872 = vmul.f32 %v864, %v864
        %v873 = vmul.f32 %v865, %v865
        %v874 = vmul.f32 %v866, %v866
        %v875 = vmul.f32 %v867, %v867
        %v876 = vmul.f32 %v868, %v868
        %v877 = vmul.f32 %v869, %v869
        %v878 = vld [vmem:[#allocation3] sm:$0xff]
        %v879 = vld [vmem:[#allocation3 + $0x8] sm:$0xff]
        %v880 = vpack.c.bf16 %v874, %v870
        %v881 = vpack.c.bf16 %v875, %v871
        %v882 = vpack.c.bf16 %v876, %v872
        %v883 = vpack.c.bf16 %v877, %v873
        %v884 = vld [vmem:[%s415] sm:$0xf]
        %v885 = vld [vmem:[%s415 + $0x4] sm:$0xf]
        %v886 = vld [vmem:[%s415 + $0x8] sm:$0xf]
        %v887 = vld [vmem:[%s415 + $0xc] sm:$0xf]
        %v888 = vld [vmem:[%s415 + $0x10] sm:$0xf]
        %v889 = vld [vmem:[%s415 + $0x14] sm:$0xf]
        %v890 = vld [vmem:[%s415 + $0x18] sm:$0xf]
        %v891 = vld [vmem:[%s415 + $0x1c] sm:$0xf]
        %v892 = vld [vmem:[%s415 + $0x20] sm:$0xf]
        %v893 = vld [vmem:[%s415 + $0x24] sm:$0xf]
        %v894 = vld [vmem:[%s415 + $0x28] sm:$0xf]
        %v895 = vld [vmem:[%s415 + $0x2c] sm:$0xf]
        %v896 = vld [vmem:[%s415 + $0x30] sm:$0xf]
        %v897 = vld [vmem:[%s415 + $0x34] sm:$0xf]
        %v898 = vld [vmem:[%s415 + $0x38] sm:$0xf]
        %v899 = vld [vmem:[%s415 + $0x3c] sm:$0xf]
        %v900 = vld [vmem:[%s415 + $0x40] sm:$0xf]
        %v901 = vld [vmem:[%s415 + $0x44] sm:$0xf]
        %v902 = vld [vmem:[%s415 + $0x48] sm:$0xf]
        %v903 = vld [vmem:[%s415 + $0x4c] sm:$0xf]
        %v904 = vld [vmem:[%s415 + $0x50] sm:$0xf]
        %v905 = vld [vmem:[%s415 + $0x54] sm:$0xf]
        %v906 = vld [vmem:[%s415 + $0x58] sm:$0xf]
        %v907 = vld [vmem:[%s415 + $0x5c] sm:$0xf]
        %v908 = vld [vmem:[%s415 + $0x60] sm:$0xf]
        %v909 = vld [vmem:[%s415 + $0x64] sm:$0xf]
        %v910 = vld [vmem:[%s415 + $0x68] sm:$0xf]
        %v911 = vld [vmem:[%s415 + $0x6c] sm:$0xf]
        %v912 = vld [vmem:[%s415 + $0x70] sm:$0xf]
        %v913 = vld [vmem:[%s415 + $0x74] sm:$0xf]
        %v914 = vld [vmem:[%s415 + $0x78] sm:$0xf]
        %v915 = vld [vmem:[%s415 + $0x7c] sm:$0xf]
        %v916 = vld [vmem:[%s415 + $0x80] sm:$0xf]
        %v917 = vld [vmem:[%s415 + $0x84] sm:$0xf]
        %v918 = vld [vmem:[%s415 + $0x88] sm:$0xf]
        %v919 = vld [vmem:[%s415 + $0x8c] sm:$0xf]
        %v920 = vld [vmem:[%s415 + $0x90] sm:$0xf]
        %v921 = vld [vmem:[%s415 + $0x94] sm:$0xf]
        %v922 = vld [vmem:[%s415 + $0x98] sm:$0xf]
        %v923 = vld [vmem:[%s415 + $0x9c] sm:$0xf]
        %v924 = vld [vmem:[%s415 + $0xa0] sm:$0xf]
        %v925 = vld [vmem:[%s415 + $0xa4] sm:$0xf]
        %v926 = vld [vmem:[%s415 + $0xa8] sm:$0xf]
        %v927 = vld [vmem:[%s415 + $0xac] sm:$0xf]
        %v928 = vld [vmem:[%s415 + $0xb0] sm:$0xf]
        %v929 = vld [vmem:[%s415 + $0xb4] sm:$0xf]
        %v930 = vld [vmem:[%s415 + $0xb8] sm:$0xf]
        %v931 = vld [vmem:[%s415 + $0xbc] sm:$0xf]
        %v932 = vld [vmem:[%s415 + $0xc0] sm:$0xf]
        %v933 = vld [vmem:[%s415 + $0xc4] sm:$0xf]
        %v934 = vld [vmem:[%s415 + $0xc8] sm:$0xf]
        %v935 = vld [vmem:[%s415 + $0xcc] sm:$0xf]
        %v936 = vld [vmem:[%s415 + $0xd0] sm:$0xf]
        %v937 = vld [vmem:[%s415 + $0xd4] sm:$0xf]
        %v938 = vld [vmem:[%s415 + $0xd8] sm:$0xf]
        %v939 = vld [vmem:[%s415 + $0xdc] sm:$0xf]
        %v940 = vld [vmem:[%s415 + $0xe0] sm:$0xf]
        %v941 = vld [vmem:[%s415 + $0xe4] sm:$0xf]
        %v942 = vld [vmem:[%s415 + $0xe8] sm:$0xf]
        %v943 = vld [vmem:[%s415 + $0xec] sm:$0xf]
        %v944 = vld [vmem:[%s415 + $0xf0] sm:$0xf]
        %v945 = vld [vmem:[%s415 + $0xf4] sm:$0xf]
        %v946 = vld [vmem:[%s415 + $0xf8] sm:$0xf]
        %v947 = vld [vmem:[%s415 + $0xfc] sm:$0xf]
        %v1012 = vunpack.c.l.b16 %v884
        %v1013 = vunpack.c.l.b16 %v885
        %v1014 = vunpack.c.l.b16 %v886
        %v1015 = vunpack.c.l.b16 %v887
        %v1016 = vunpack.c.l.b16 %v888
        %v1017 = vunpack.c.l.b16 %v889
        %v1018 = vunpack.c.l.b16 %v890
        %v1019 = vunpack.c.l.b16 %v891
        %v1020 = vunpack.c.l.b16 %v892
        %v1021 = vunpack.c.l.b16 %v893
        %v1022 = vunpack.c.l.b16 %v894
        %v1023 = vunpack.c.l.b16 %v895
        %v1024 = vunpack.c.l.b16 %v896
        %v1025 = vunpack.c.l.b16 %v897
        %v1026 = vunpack.c.l.b16 %v898
        %v1027 = vunpack.c.l.b16 %v899
        %v1028 = vunpack.c.l.b16 %v900
        %v1029 = vunpack.c.l.b16 %v901
        %v1030 = vunpack.c.l.b16 %v902
        %v1031 = vunpack.c.l.b16 %v903
        %v1032 = vunpack.c.l.b16 %v904
        %v1033 = vunpack.c.l.b16 %v905
        %v1034 = vunpack.c.l.b16 %v906
        %v1035 = vunpack.c.l.b16 %v907
        %v1036 = vunpack.c.l.b16 %v908
        %v1037 = vunpack.c.l.b16 %v909
        %v1038 = vunpack.c.l.b16 %v910
        %v1039 = vunpack.c.l.b16 %v911
        %v1040 = vunpack.c.l.b16 %v912
        %v1041 = vunpack.c.l.b16 %v913
        %v1042 = vunpack.c.l.b16 %v914
        %v1043 = vunpack.c.l.b16 %v915
        %v1044 = vunpack.c.l.b16 %v916
        %v1045 = vunpack.c.l.b16 %v917
        %v1046 = vunpack.c.l.b16 %v918
        %v1047 = vunpack.c.l.b16 %v919
        %v1048 = vunpack.c.l.b16 %v920
        %v1049 = vunpack.c.l.b16 %v921
        %v1050 = vunpack.c.l.b16 %v922
        %v1051 = vunpack.c.l.b16 %v923
        %v1052 = vunpack.c.l.b16 %v924
        %v1053 = vunpack.c.l.b16 %v925
        %v1054 = vunpack.c.l.b16 %v926
        %v1055 = vunpack.c.l.b16 %v927
        %v1056 = vunpack.c.l.b16 %v928
        %v1057 = vunpack.c.l.b16 %v929
        %v1058 = vunpack.c.l.b16 %v930
        %v1059 = vunpack.c.l.b16 %v931
        %v1060 = vunpack.c.l.b16 %v932
        %v1061 = vunpack.c.l.b16 %v933
        %v1062 = vunpack.c.l.b16 %v934
        %v1063 = vunpack.c.l.b16 %v935
        %v1064 = vunpack.c.l.b16 %v936
        %v1065 = vunpack.c.l.b16 %v937
        %v1066 = vunpack.c.l.b16 %v938
        %v1067 = vunpack.c.l.b16 %v939
        %v1068 = vunpack.c.l.b16 %v940
        %v1069 = vunpack.c.l.b16 %v941
        %v1070 = vunpack.c.l.b16 %v942
        %v1071 = vunpack.c.l.b16 %v943
        %v1072 = vunpack.c.l.b16 %v944
        %v1073 = vunpack.c.l.b16 %v945
        %v1074 = vunpack.c.l.b16 %v946
        %v1075 = vunpack.c.l.b16 %v947
        %v1076 = vpack.c.b16 %v1013, %v1012
        %v1077 = vpack.c.b16 %v1015, %v1014
        %v1078 = vpack.c.b16 %v1017, %v1016
        %v1079 = vpack.c.b16 %v1019, %v1018
        %v1080 = vpack.c.b16 %v1021, %v1020
        %v1081 = vpack.c.b16 %v1023, %v1022
        %v1082 = vpack.c.b16 %v1025, %v1024
        %v1083 = vpack.c.b16 %v1027, %v1026
        %v1084 = vpack.c.b16 %v1029, %v1028
        %v1085 = vpack.c.b16 %v1031, %v1030
        %v1086 = vpack.c.b16 %v1033, %v1032
        %v1087 = vpack.c.b16 %v1035, %v1034
        %v1088 = vpack.c.b16 %v1037, %v1036
        %v1089 = vpack.c.b16 %v1039, %v1038
        %v1090 = vpack.c.b16 %v1041, %v1040
        %v1091 = vpack.c.b16 %v1043, %v1042
        %v1092 = vpack.c.b16 %v1045, %v1044
        %v1093 = vpack.c.b16 %v1047, %v1046
        %v1094 = vpack.c.b16 %v1049, %v1048
        %v1095 = vpack.c.b16 %v1051, %v1050
        %v1096 = vpack.c.b16 %v1053, %v1052
        %v1097 = vpack.c.b16 %v1055, %v1054
        %v1098 = vpack.c.b16 %v1057, %v1056
        %v1099 = vpack.c.b16 %v1059, %v1058
        %v1100 = vpack.c.b16 %v1061, %v1060
        %v1101 = vpack.c.b16 %v1063, %v1062
        %v1102 = vpack.c.b16 %v1065, %v1064
        %v1103 = vpack.c.b16 %v1067, %v1066
        %v1104 = vpack.c.b16 %v1069, %v1068
        %v1105 = vpack.c.b16 %v1071, %v1070
        %v1106 = vpack.c.b16 %v1073, %v1072
        %v1107 = vpack.c.b16 %v1075, %v1074
        %1140 = vmatprep.subr.bf16.mxu0 0
        %1141 = vmatpush1.bf16.msra.mxu0 %v1076
        %1142 = vmatprep.subr.bf16.mxu0 0
        %1143 = vmatpush1.bf16.msra.mxu0 %v1077
        %1144 = vmatprep.subr.bf16.mxu0 0
        %1145 = vmatpush1.bf16.msra.mxu0 %v1078
        %1146 = vmatprep.subr.bf16.mxu0 0
        %1147 = vmatpush1.bf16.msra.mxu0 %v1079
        %1148 = vmatprep.subr.bf16.mxu0 0
        %1149 = vmatpush1.bf16.msra.mxu0 %v1080
        %1150 = vmatprep.subr.bf16.mxu0 0
        %1151 = vmatpush1.bf16.msra.mxu0 %v1081
        %1152 = vmatprep.subr.bf16.mxu0 0
        %1153 = vmatpush1.bf16.msra.mxu0 %v1082
        %1154 = vmatprep.subr.bf16.mxu0 0
        %1155 = vmatpush1.bf16.msra.mxu0 %v1083
        %1156 = vmatprep.subr.bf16.mxu0 0
        %1157 = vmatpush1.bf16.msra.mxu0 %v1084
        %1158 = vmatprep.subr.bf16.mxu0 0
        %1159 = vmatpush1.bf16.msra.mxu0 %v1085
        %1160 = vmatprep.subr.bf16.mxu0 0
        %1161 = vmatpush1.bf16.msra.mxu0 %v1086
        %1162 = vmatprep.subr.bf16.mxu0 0
        %1163 = vmatpush1.bf16.msra.mxu0 %v1087
        %1164 = vmatprep.subr.bf16.mxu0 0
        %1165 = vmatpush1.bf16.msra.mxu0 %v1088
        %1166 = vmatprep.subr.bf16.mxu0 0
        %1167 = vmatpush1.bf16.msra.mxu0 %v1089
        %1168 = vmatprep.subr.bf16.mxu0 0
        %1169 = vmatpush1.bf16.msra.mxu0 %v1090
        %1170 = vmatprep.subr.bf16.mxu0 0
        %1171 = vmatpush1.bf16.msra.mxu0 %v1091
        %1172 = vmatprep.mubr.bf16.mxu0 %v881
        %1173 = vmatmul.mubr.bf16.gmra.mrb[0].mxu0 %v880
        %v1174 = vpop.f32.mrb[0].mxu0
        %v1175 = vadd.f32 0.0, %v1174
        %v1176 = vpop.f32.mrb[0].mxu0
        %v1177 = vpop.f32.mrb[0].mxu0
        %v1178 = vadd.f32 0.0, %v1177
        %v1179 = vpop.f32.mrb[0].mxu0
        %1180 = vdwg.mxu0
        %1181 = vmatprep.subr.bf16.mxu0 0
        %1182 = vmatpush1.bf16.msra.mxu0 %v1092
        %1183 = vmatprep.subr.bf16.mxu0 0
        %1184 = vmatpush1.bf16.msra.mxu0 %v1093
        %1185 = vmatprep.subr.bf16.mxu0 0
        %1186 = vmatpush1.bf16.msra.mxu0 %v1094
        %1187 = vmatprep.subr.bf16.mxu0 0
        %1188 = vmatpush1.bf16.msra.mxu0 %v1095
        %1189 = vmatprep.subr.bf16.mxu0 0
        %1190 = vmatpush1.bf16.msra.mxu0 %v1096
        %1191 = vmatprep.subr.bf16.mxu0 0
        %1192 = vmatpush1.bf16.msra.mxu0 %v1097
        %1193 = vmatprep.subr.bf16.mxu0 0
        %1194 = vmatpush1.bf16.msra.mxu0 %v1098
        %1195 = vmatprep.subr.bf16.mxu0 0
        %1196 = vmatpush1.bf16.msra.mxu0 %v1099
        %1197 = vmatprep.subr.bf16.mxu0 0
        %1198 = vmatpush1.bf16.msra.mxu0 %v1100
        %1199 = vmatprep.subr.bf16.mxu0 0
        %1200 = vmatpush1.bf16.msra.mxu0 %v1101
        %1201 = vmatprep.subr.bf16.mxu0 0
        %1202 = vmatpush1.bf16.msra.mxu0 %v1102
        %1203 = vmatprep.subr.bf16.mxu0 0
        %1204 = vmatpush1.bf16.msra.mxu0 %v1103
        %1205 = vmatprep.subr.bf16.mxu0 0
        %1206 = vmatpush1.bf16.msra.mxu0 %v1104
        %1207 = vmatprep.subr.bf16.mxu0 0
        %1208 = vmatpush1.bf16.msra.mxu0 %v1105
        %1209 = vmatprep.subr.bf16.mxu0 0
        %1210 = vmatpush1.bf16.msra.mxu0 %v1106
        %1211 = vmatprep.subr.bf16.mxu0 0
        %1212 = vmatpush1.bf16.msra.mxu0 %v1107
        %1213 = vmatprep.mubr.bf16.mxu0 %v883
        %1214 = vmatmul.mubr.bf16.gmra.mrb[0].mxu0 %v882
        %v1215 = vpop.f32.mrb[0].mxu0
        %v1216 = vadd.f32 %v1175, %v1215
        %v1217 = vpop.f32.mrb[0].mxu0
        %v1218 = vpop.f32.mrb[0].mxu0
        %v1219 = vadd.f32 %v1178, %v1218
        %v1220 = vpop.f32.mrb[0].mxu0
        %1221 = vdwg.mxu0
        %v1222 = vadd.f32 %v878, %v1216
        %v1223 = vadd.f32 %v879, %v1219
        %1224 = vst [vmem:[#allocation3] sm:$0xff] %v1222
        %1225 = vst [vmem:[#allocation3 + $0x8] sm:$0xff] %v1223
        // Predicated region
        $region53: #{_cmix_pallas.1} parent=47 // pred_check
          %p1226 = pneg %p419
        $region54: #{_cmix_pallas.1} parent=47 // pred_check_branch
          %1228 = sbr.rel (%p1226) target = $region56
        $region55: #{_cmix_pallas.1} parent=47 // pred_region
          %v1229 = vld [vmem:[#allocation4] sm:$0xff]
          %v1230 = vld [vmem:[#allocation4 + $0x8] sm:$0xff]
          %v1231 = vxor.u32 %v1229, 2147483648
          %v1232 = vxor.u32 %v1230, 2147483648
          %v1233 = vmul.f32 %v1231, 1.442695
          %v1234 = vpow.pop %v1233
          %v1235 = vmul.f32 %v1232, 1.442695
          %v1236 = vpow.pop %v1235
          %v1237 = vadd.f32 %v1234, 1.0
          %v1238 = vadd.f32 %v1236, 1.0
          %v1239 = vrcp.pop %v1237
          %v1240 = vmul.f32 1.0, %v1239
          %v1241 = vrcp.pop %v1238
          %v1242 = vmul.f32 1.0, %v1241
          %v1243 = vld [vmem:[#allocation3] sm:$0xff]
          %v1244 = vld [vmem:[#allocation3 + $0x8] sm:$0xff]
          %v1245 = vmul.f32 %v1240, %v1243
          %v1246 = vmul.f32 %v1242, %v1244
          %1247 = vst [vmem:[%s378] sm:$0xff] %v1245
          %1248 = vst [vmem:[%s378 + $0x8] sm:$0xff] %v1246
        $region56: #{_cmix_pallas.1} parent=47 // pred_fallthru
          _
        %s1249 = sand.u32 %s229, 1
        %s1250 = scalar_lea.sflag [#allocation6], %s1249
        %s1251 = sand.u32 %s229, 1
        %s1252 = smul.addr %s1251, 16
        %s1253 = scalar_lea.vmem [#allocation5], %s1252
        // Predicated region
        $region57: #{_cmix_pallas.1} parent=47 // pred_check
          %p1254 = pneg %p239
        $region58: #{_cmix_pallas.1} parent=47 // pred_check_branch
          %1256 = sbr.rel (%p1254) target = $region60
        $region59: #{_cmix_pallas.1} parent=47 // pred_region
          %s1257 = smul.u32 2, %s27
          %s1259 = ssub.s32 256, 256
          %1260 = vsyncadd %s1250, %s1259
          %s1261 = smul.addr %s26, 2
          %s1262 = sadd.s32 %s1257, %s1261
          %s1263 = smul.addr %s1262, 128
          %s1264 = scalar_lea.hbm %s7, %s1263
          %s1265 = sshll.u32 %s1253, 4
          %s1266 = int_to_ptr.vmem [resolvable:$true] %s1265
          %1271 = dma.vmem_to_hbm [thread:$0]  %s1266, 256, %s1264, %s1250, 128, 128, 8
        $region60: #{_cmix_pallas.1} parent=47 // pred_fallthru
          _
      $region48: #{_cmix_pallas.1} parent=5 // pred_fallthru
        _
      %p1272 = scmp.le.s32.totalorder 2, %s16
      // Predicated region
      $region61: #{_cmix_pallas.1} parent=5 // pred_check
        %p1273 = pneg %p1272
      $region62: #{_cmix_pallas.1} parent=5 // pred_check_branch
        %1275 = sbr.rel (%p1273) target = $region64
      $region63: #{_cmix_pallas.1} parent=5 // pred_region
        %s1276 = ssub.s32 %s16, 2
        // Predicated region
        $region65: #{_cmix_pallas.1} parent=63 // pred_check
          %p1277 = pneg %p245
        $region66: #{_cmix_pallas.1} parent=63 // pred_check_branch
          %1279 = sbr.rel (%p1277) target = $region68
        $region67: #{_cmix_pallas.1} parent=63 // pred_region
          %s1280 = sand.u32 %s230, 1
          %s1281 = scalar_lea.sflag [#allocation6], %s1280
          %s1282 = sand.u32 %s230, 1
          %s1283 = smul.addr %s1282, 16
          %s1284 = scalar_lea.vmem [#allocation5], %s1283
          %1285 = dma.done %s1281, 256
        $region68: #{_cmix_pallas.1} parent=63 // pred_fallthru
          _
      $region64: #{_cmix_pallas.1} parent=5 // pred_fallthru
        _
    $region6: #{_cmix_pallas.1} parent=1 // loop_footer
      %s20 = sadd.s32 1, %s16
    $region7: #{_cmix_pallas.1} parent=1 // loop_footer_branch
      %15 = sbr.rel target = $region3
    $region8: #{_cmix_pallas.1} parent=1 // loop_exit
      _
    %1286 = vsyncpa [#allocation6], 1
    %s1287 = scalar_lea.sflag [#allocation6], 1
    %1288 = vsyncpa %s1287, 1

// kernel: _cmix_pallas.1
$region0: #{_cmix_pallas.1}
  #allocation0 [shape = 'u32[]', space=smem, size = 0x4, offset = 0x4, fixed_abs, tag = 'smem constant byte address 0x4 - core index']
  #allocation1 [shape = 'u32[144,128]{1,0:T(1,128)}', space=vmem, size = 0x12000, scoped, tag = 'internal scratch']
  #allocation2 [shape = 'bf16[16,128]{1,0:T(16,128)(2,1)}', space=vmem, size = 0x1000, scoped, tag = 'scratch operand']
  #allocation3 [shape = 'f32[16,128]{1,0:T(8,128)}', space=vmem, size = 0x2000, scoped, tag = 'scratch operand']
  #allocation4 [shape = 'f32[16,128]{1,0:T(8,128)}', space=vmem, size = 0x2000, scoped, tag = 'scratch operand']
  %s0 = inlined_call_operand.vmem [shape: f32[2,16,128], index: 0, kind: input, shape index: {}, may-alias: {0,1}]
  %s1 = inlined_call_operand.vmem [shape: f32[2,16,128], index: 1, kind: input, shape index: {}, may-alias: {0,1}]
  %s2 = inlined_call_operand.vmem [shape: f32[1,128], index: 2, kind: input, shape index: {}]
  %s3 = inlined_call_operand.vmem [shape: f32[1,128], index: 3, kind: input, shape index: {}]
  %s4 = inlined_call_operand.vmem [shape: bf16[128,512], index: 4, kind: input, shape index: {}]
  %s5 = inlined_call_operand.vmem [shape: bf16[128,128], index: 5, kind: input, shape index: {}]
  %s6 = inlined_call_operand.vmem [shape: bf16[512,128], index: 6, kind: input, shape index: {}]
  %s7 = inlined_call_operand.hbm [shape: f32[2,16,128], index: 7, kind: output, shape index: {}]
  %s8 = sld [smem:[#allocation0]]
  $region69: #{_cmix_pallas.1} parent=0
    _
  %s10 = ssub.s32 1, %s8
  %s11 = scalar_select 0, %s10, %s8
  $region1: #{_cmix_pallas.1} parent=0
    #allocation5 [shape = 'u8[16384]{0}', space=vmem, size = 0x4000, scoped, tag = 'output window, operand 0']
    #allocation6 [shape = 's32[2]{0}', space=sflag, size = 0x8, scoped, tag = 'scoped memory for _cmix_pallas.1']
    %12 = vsyncpa [#allocation6], 0
    %s13 = scalar_lea.sflag [#allocation6], 1
    %14 = vsyncpa %s13, 0
    loop: start=0, step=1, limit=4
    $region2: #{_cmix_pallas.1} parent=1 // loop_pre_header
      _
    $region3: #{_cmix_pallas.1} parent=1 // loop_header
      %s16 = sphi 0, %s20
      %p17 = scmp.ge.s32.totalorder %s16, 4
      %s23 = sphi 0, %s42
      %s24 = sphi 0, %s38
      %s25 = sphi 0, %s34
      %s26 = sphi 0, %s23
      %s27 = sphi 0, %s24
      %s28 = sphi 0, %s25
      %s29 = sphi 0, %s26
      %s30 = sphi 0, %s27
      %s31 = sphi 0, %s28
      %s47 = sphi 0, %s49
      %s50 = sphi 0, %s47
      %s51 = sphi 0, %s50
      %s67 = sphi 0, %s51
      %s83 = sphi 0, %s85
      %s86 = sphi 0, %s83
      %s87 = sphi 0, %s86
      %s103 = sphi 0, %s87
      %s107 = sphi 0, %s107
      %s109 = sphi 0, %s107
      %s110 = sphi 0, %s109
      %s124 = sphi 0, %s110
      %s128 = sphi 0, %s128
      %s130 = sphi 0, %s128
      %s131 = sphi 0, %s130
      %s145 = sphi 0, %s131
      %s151 = sphi 0, %s153
      %s154 = sphi 0, %s151
      %s155 = sphi 0, %s154
      %s171 = sphi 0, %s155
      %s175 = sphi 0, %s175
      %s177 = sphi 0, %s175
      %s178 = sphi 0, %s177
      %s192 = sphi 0, %s178
      %s198 = sphi 0, %s200
      %s201 = sphi 0, %s198
      %s202 = sphi 0, %s201
      %s218 = sphi 0, %s202
      %s226 = sphi 0, %s228
      %s229 = sphi 0, %s226
      %s230 = sphi 0, %s229
      %s246 = sphi 0, %s230
    $region4: #{_cmix_pallas.1} parent=1 // loop_header_branch
      %19 = sbr.rel (%p17) target = $region8
    $region5: #{_cmix_pallas.1} parent=1 // loop_body
      %s21 = ssub.s32 %s16, 1
      %s22 = ssub.s32 %s16, 2
      %s32 = sadd.s32 1, %s25
      %p33 = scmp.ge.s32.totalorder %s32, 1
      %s34 = scalar_select %p33, 0, %s32
      %s35 = sadd.s32 1, %s24
      %s36 = scalar_select %p33, %s35, %s24
      %p37 = scmp.ge.s32.totalorder %s36, 1
      %s38 = scalar_select %p37, 0, %s36
      %s39 = sadd.s32 1, %s23
      %s40 = scalar_select %p37, %s39, %s23
      %p41 = scmp.ge.s32.totalorder %s40, 2
      %s42 = scalar_select %p41, 0, %s40
      %s43 = ssub.s32 %s23, %s42
      %s44 = ssub.s32 %s24, %s38
      %s45 = sor.u32 %s43, %s44
      %p46 = scmp.eq.s32.totalorder %s45, 0
      %s48 = sadd.s32 %s47, 1
      %s49 = scalar_select %p46, %s47, %s48
      %p52 = pneg %p46
      %p53 = scmp.eq.s32.totalorder %s16, 1
      %p54 = por %p52, %p53
      %p55 = scmp.ne.s32.totalorder %s47, %s50
      %p56 = scmp.eq.s32.totalorder %s16, 0
      %p57 = por %p55, %p56
      %p58 = scmp.ne.s32.totalorder %s47, %s50
      %p59 = scmp.eq.s32.totalorder %s21, 1
      %p60 = por %p58, %p59
      %p61 = scmp.ne.s32.totalorder %s50, %s51
      %p62 = scmp.eq.s32.totalorder %s21, 0
      %p63 = por %p61, %p62
      %p64 = scmp.ne.s32.totalorder %s50, %s51
      %p65 = scmp.eq.s32.totalorder %s22, 1
      %p66 = por %p64, %p65
      %p68 = scmp.ne.s32.totalorder %s51, %s67
      %p69 = scmp.eq.s32.totalorder %s22, 0
      %p70 = por %p68, %p69
      %s71 = smul.u32 %s24, 2
      %s72 = ssub.s32 %s71, 1
      %p73 = scmp.gt.s32.totalorder %s72, 0
      %s74 = scalar_select %p73, %s72, 0
      %s75 = smul.u32 %s38, 2
      %s76 = ssub.s32 %s75, 1
      %p77 = scmp.gt.s32.totalorder %s76, 0
      %s78 = scalar_select %p77, %s76, 0
      %s79 = ssub.s32 %s23, %s42
      %s80 = ssub.s32 %s74, %s78
      %s81 = sor.u32 %s79, %s80
      %p82 = scmp.eq.s32.totalorder %s81, 0
      %s84 = sadd.s32 %s83, 1
      %s85 = scalar_select %p82, %s83, %s84
      %p88 = pneg %p82
      %p89 = scmp.eq.s32.totalorder %s16, 1
      %p90 = por %p88, %p89
      %p91 = scmp.ne.s32.totalorder %s83, %s86
      %p92 = scmp.eq.s32.totalorder %s16, 0
      %p93 = por %p91, %p92
      %p94 = scmp.ne.s32.totalorder %s83, %s86
      %p95 = scmp.eq.s32.totalorder %s21, 1
      %p96 = por %p94, %p95
      %p97 = scmp.ne.s32.totalorder %s86, %s87
      %p98 = scmp.eq.s32.totalorder %s21, 0
      %p99 = por %p97, %p98
      %p100 = scmp.ne.s32.totalorder %s86, %s87
      %p101 = scmp.eq.s32.totalorder %s22, 1
      %p102 = por %p100, %p101
      %p104 = scmp.ne.s32.totalorder %s87, %s103
      %p105 = scmp.eq.s32.totalorder %s22, 0
      %p106 = por %p104, %p105
      %s108 = sadd.s32 %s107, 1
      %p111 = scmp.eq.s32.totalorder %s16, 1
      %p112 = scmp.ne.s32.totalorder %s107, %s109
      %p113 = scmp.eq.s32.totalorder %s16, 0
      %p114 = por %p112, %p113
      %p115 = scmp.ne.s32.totalorder %s107, %s109
      %p116 = scmp.eq.s32.totalorder %s21, 1
      %p117 = por %p115, %p116
      %p118 = scmp.ne.s32.totalorder %s109, %s110
      %p119 = scmp.eq.s32.totalorder %s21, 0
      %p120 = por %p118, %p119
      %p121 = scmp.ne.s32.totalorder %s109, %s110
      %p122 = scmp.eq.s32.totalorder %s22, 1
      %p123 = por %p121, %p122
      %p125 = scmp.ne.s32.totalorder %s110, %s124
      %p126 = scmp.eq.s32.totalorder %s22, 0
      %p127 = por %p125, %p126
      %s129 = sadd.s32 %s128, 1
      %p132 = scmp.eq.s32.totalorder %s16, 1
      %p133 = scmp.ne.s32.totalorder %s128, %s130
      %p134 = scmp.eq.s32.totalorder %s16, 0
      %p135 = por %p133, %p134
      %p136 = scmp.ne.s32.totalorder %s128, %s130
      %p137 = scmp.eq.s32.totalorder %s21, 1
      %p138 = por %p136, %p137
      %p139 = scmp.ne.s32.totalorder %s130, %s131
      %p140 = scmp.eq.s32.totalorder %s21, 0
      %p141 = por %p139, %p140
      %p142 = scmp.ne.s32.totalorder %s130, %s131
      %p143 = scmp.eq.s32.totalorder %s22, 1
      %p144 = por %p142, %p143
      %p146 = scmp.ne.s32.totalorder %s131, %s145
      %p147 = scmp.eq.s32.totalorder %s22, 0
      %p148 = por %p146, %p147
      %s149 = ssub.s32 %s25, %s34
      %p150 = scmp.eq.s32.totalorder %s149, 0
      %s152 = sadd.s32 %s151, 1
      %s153 = scalar_select %p150, %s151, %s152
      %p156 = pneg %p150
      %p157 = scmp.eq.s32.totalorder %s16, 1
      %p158 = por %p156, %p157
      %p159 = scmp.ne.s32.totalorder %s151, %s154
      %p160 = scmp.eq.s32.totalorder %s16, 0
      %p161 = por %p159, %p160
      %p162 = scmp.ne.s32.totalorder %s151, %s154
      %p163 = scmp.eq.s32.totalorder %s21, 1
      %p164 = por %p162, %p163
      %p165 = scmp.ne.s32.totalorder %s154, %s155
      %p166 = scmp.eq.s32.totalorder %s21, 0
      %p167 = por %p165, %p166
      %p168 = scmp.ne.s32.totalorder %s154, %s155
      %p169 = scmp.eq.s32.totalorder %s22, 1
      %p170 = por %p168, %p169
      %p172 = scmp.ne.s32.totalorder %s155, %s171
      %p173 = scmp.eq.s32.totalorder %s22, 0
      %p174 = por %p172, %p173
      %s176 = sadd.s32 %s175, 1
      %p179 = scmp.eq.s32.totalorder %s16, 1
      %p180 = scmp.ne.s32.totalorder %s175, %s177
      %p181 = scmp.eq.s32.totalorder %s16, 0
      %p182 = por %p180, %p181
      %p183 = scmp.ne.s32.totalorder %s175, %s177
      %p184 = scmp.eq.s32.totalorder %s21, 1
      %p185 = por %p183, %p184
      %p186 = scmp.ne.s32.totalorder %s177, %s178
      %p187 = scmp.eq.s32.totalorder %s21, 0
      %p188 = por %p186, %p187
      %p189 = scmp.ne.s32.totalorder %s177, %s178
      %p190 = scmp.eq.s32.totalorder %s22, 1
      %p191 = por %p189, %p190
      %p193 = scmp.ne.s32.totalorder %s178, %s192
      %p194 = scmp.eq.s32.totalorder %s22, 0
      %p195 = por %p193, %p194
      %s196 = ssub.s32 %s25, %s34
      %p197 = scmp.eq.s32.totalorder %s196, 0
      %s199 = sadd.s32 %s198, 1
      %s200 = scalar_select %p197, %s198, %s199
      %p203 = pneg %p197
      %p204 = scmp.eq.s32.totalorder %s16, 1
      %p205 = por %p203, %p204
      %p206 = scmp.ne.s32.totalorder %s198, %s201
      %p207 = scmp.eq.s32.totalorder %s16, 0
      %p208 = por %p206, %p207
      %p209 = scmp.ne.s32.totalorder %s198, %s201
      %p210 = scmp.eq.s32.totalorder %s21, 1
      %p211 = por %p209, %p210
      %p212 = scmp.ne.s32.totalorder %s201, %s202
      %p213 = scmp.eq.s32.totalorder %s21, 0
      %p214 = por %p212, %p213
      %p215 = scmp.ne.s32.totalorder %s201, %s202
      %p216 = scmp.eq.s32.totalorder %s22, 1
      %p217 = por %p215, %p216
      %p219 = scmp.ne.s32.totalorder %s202, %s218
      %p220 = scmp.eq.s32.totalorder %s22, 0
      %p221 = por %p219, %p220
      %s222 = ssub.s32 %s23, %s42
      %s223 = ssub.s32 %s24, %s38
      %s224 = sor.u32 %s222, %s223
      %p225 = scmp.eq.s32.totalorder %s224, 0
      %s227 = sadd.s32 %s226, 1
      %s228 = scalar_select %p225, %s226, %s227
      %p231 = pneg %p225
      %p232 = scmp.eq.s32.totalorder %s16, 1
      %p233 = por %p231, %p232
      %p234 = scmp.ne.s32.totalorder %s226, %s229
      %p235 = scmp.eq.s32.totalorder %s16, 0
      %p236 = por %p234, %p235
      %p237 = scmp.ne.s32.totalorder %s226, %s229
      %p238 = scmp.eq.s32.totalorder %s21, 1
      %p239 = por %p237, %p238
      %p240 = scmp.ne.s32.totalorder %s229, %s230
      %p241 = scmp.eq.s32.totalorder %s21, 0
      %p242 = por %p240, %p241
      %p243 = scmp.ne.s32.totalorder %s229, %s230
      %p244 = scmp.eq.s32.totalorder %s22, 1
      %p245 = por %p243, %p244
      %p247 = scmp.ne.s32.totalorder %s230, %s246
      %p248 = scmp.eq.s32.totalorder %s22, 0
      %p249 = por %p247, %p248
      %p250 = scmp.le.s32.totalorder 1, %s16
      %p251 = scmp.lt.s32.totalorder %s16, 3
      %p252 = pnand %p250, %p251
      %p253 = pneg %p252
      // Predicated region
      $region9: #{_cmix_pallas.1} parent=5 // pred_check
        _
      $region10: #{_cmix_pallas.1} parent=5 // pred_check_branch
        %255 = sbr.rel (%p252) target = $region12
      $region11: #{_cmix_pallas.1} parent=5 // pred_region
        %s256 = ssub.s32 %s16, 1
        // Predicated region
        $region13: #{_cmix_pallas.1} parent=11 // pred_check
          %p257 = pneg %p120
        $region14: #{_cmix_pallas.1} parent=11 // pred_check_branch
          %259 = sbr.rel (%p257) target = $region16
        $region15: #{_cmix_pallas.1} parent=11 // pred_region
          _
        $region16: #{_cmix_pallas.1} parent=11 // pred_fallthru
          _
        // Predicated region
        $region17: #{_cmix_pallas.1} parent=11 // pred_check
          %p260 = pneg %p141
        $region18: #{_cmix_pallas.1} parent=11 // pred_check_branch
          %262 = sbr.rel (%p260) target = $region20
        $region19: #{_cmix_pallas.1} parent=11 // pred_region
          _
        $region20: #{_cmix_pallas.1} parent=11 // pred_fallthru
          _
        // Predicated region
        $region21: #{_cmix_pallas.1} parent=11 // pred_check
          %p263 = pneg %p167
        $region22: #{_cmix_pallas.1} parent=11 // pred_check_branch
          %265 = sbr.rel (%p263) target = $region24
        $region23: #{_cmix_pallas.1} parent=11 // pred_region
          %s266 = smul.u32 4, %s28
          %p267 = scmp.lt.s32.totalorder %s266, 3
          %s268 = scalar_select %p267, %s266, 3
          %s269 = smul.addr %s268, 4
          %s270 = scalar_lea.vmem %s4, %s269
          %s271 = smul.u32 4, %s28
        $region24: #{_cmix_pallas.1} parent=11 // pred_fallthru
          _
        // Predicated region
        $region25: #{_cmix_pallas.1} parent=11 // pred_check
          %p272 = pneg %p188
        $region26: #{_cmix_pallas.1} parent=11 // pred_check_branch
          %274 = sbr.rel (%p272) target = $region28
        $region27: #{_cmix_pallas.1} parent=11 // pred_region
          _
        $region28: #{_cmix_pallas.1} parent=11 // pred_fallthru
          _
        // Predicated region
        $region29: #{_cmix_pallas.1} parent=11 // pred_check
          %p275 = pneg %p214
        $region30: #{_cmix_pallas.1} parent=11 // pred_check_branch
          %277 = sbr.rel (%p275) target = $region32
        $region31: #{_cmix_pallas.1} parent=11 // pred_region
          %s278 = smul.u32 64, %s28
          %p279 = scmp.lt.s32.totalorder %s278, 63
          %s280 = scalar_select %p279, %s278, 63
          %s281 = smul.addr %s280, 4
          %s282 = scalar_lea.vmem %s6, %s281
          %s283 = smul.u32 64, %s28
        $region32: #{_cmix_pallas.1} parent=11 // pred_fallthru
          _
      $region12: #{_cmix_pallas.1} parent=5 // pred_fallthru
        _
      %p284 = scmp.lt.s32.totalorder %s16, 2
      // Predicated region
      $region33: #{_cmix_pallas.1} parent=5 // pred_check
        %p285 = pneg %p284
      $region34: #{_cmix_pallas.1} parent=5 // pred_check_branch
        %287 = sbr.rel (%p285) target = $region36
      $region35: #{_cmix_pallas.1} parent=5 // pred_region
        // Predicated region
        $region37: #{_cmix_pallas.1} parent=35 // pred_check
          %p288 = pneg %p57
        $region38: #{_cmix_pallas.1} parent=35 // pred_check_branch
          %290 = sbr.rel (%p288) target = $region40
        $region39: #{_cmix_pallas.1} parent=35 // pred_region
          %s291 = smul.u32 2, %s24
          %p292 = scmp.lt.s32.totalorder %s23, 1
          %s293 = scalar_select %p292, %s23, 1
          %p294 = scmp.lt.s32.totalorder %s291, 1
          %s295 = scalar_select %p294, %s291, 1
          %s296 = smul.addr %s293, 2
          %s297 = sadd.s32 %s295, %s296
          %s298 = smul.addr %s297, 8
          %s299 = scalar_lea.vmem %s0, %s298
          %s300 = smul.u32 2, %s24
        $region40: #{_cmix_pallas.1} parent=35 // pred_fallthru
          _
        // Predicated region
        $region41: #{_cmix_pallas.1} parent=35 // pred_check
          %p301 = pneg %p93
        $region42: #{_cmix_pallas.1} parent=35 // pred_check_branch
          %303 = sbr.rel (%p301) target = $region44
        $region43: #{_cmix_pallas.1} parent=35 // pred_region
          %s304 = smul.u32 %s24, 2
          %s305 = ssub.s32 %s304, 1
          %p306 = scmp.gt.s32.totalorder %s305, 0
          %s307 = scalar_select %p306, %s305, 0
          %p308 = scmp.lt.s32.totalorder %s23, 1
          %s309 = scalar_select %p308, %s23, 1
          %p310 = scmp.lt.s32.totalorder %s307, 1
          %s311 = scalar_select %p310, %s307, 1
          %s312 = smul.addr %s309, 2
          %s313 = sadd.s32 %s311, %s312
          %s314 = smul.addr %s313, 8
          %s315 = scalar_lea.vmem %s1, %s314
          %s316 = smul.u32 %s24, 2
          %s317 = ssub.s32 %s316, 1
          %p318 = scmp.gt.s32.totalorder %s317, 0
          %s319 = scalar_select %p318, %s317, 0
        $region44: #{_cmix_pallas.1} parent=35 // pred_fallthru
          _
      $region36: #{_cmix_pallas.1} parent=5 // pred_fallthru
        _
      %p320 = scmp.le.s32.totalorder 1, %s16
      %p321 = scmp.lt.s32.totalorder %s16, 3
      %p322 = pnand %p320, %p321
      %p323 = pneg %p322
      // Predicated region
      $region45: #{_cmix_pallas.1} parent=5 // pred_check
        _
      $region46: #{_cmix_pallas.1} parent=5 // pred_check_branch
        %325 = sbr.rel (%p322) target = $region48
      $region47: #{_cmix_pallas.1} parent=5 // pred_region
        %s326 = ssub.s32 %s16, 1
        %s327 = smul.u32 2, %s27
        %p328 = scmp.lt.s32.totalorder %s26, 1
        %s329 = scalar_select %p328, %s26, 1
        %p330 = scmp.lt.s32.totalorder %s327, 1
        %s331 = scalar_select %p330, %s327, 1
        %s332 = smul.addr %s329, 2
        %s333 = sadd.s32 %s331, %s332
        %s334 = smul.addr %s333, 8
        %s335 = scalar_lea.vmem %s0, %s334
        %p336 = pneg %p63
        %p337 = pneg %p60
        %s338 = smul.u32 %s27, 2
        %s339 = ssub.s32 %s338, 1
        %p340 = scmp.gt.s32.totalorder %s339, 0
        %s341 = scalar_select %p340, %s339, 0
        %p342 = scmp.lt.s32.totalorder %s26, 1
        %s343 = scalar_select %p342, %s26, 1
        %p344 = scmp.lt.s32.totalorder %s341, 1
        %s345 = scalar_select %p344, %s341, 1
        %s346 = smul.addr %s343, 2
        %s347 = sadd.s32 %s345, %s346
        %s348 = smul.addr %s347, 8
        %s349 = scalar_lea.vmem %s1, %s348
        %p350 = pneg %p99
        %p351 = pneg %p96
        %p352 = pneg %p120
        %p353 = pneg %p117
        %p354 = pneg %p141
        %p355 = pneg %p138
        %s356 = smul.u32 4, %s28
        %p357 = scmp.lt.s32.totalorder %s356, 3
        %s358 = scalar_select %p357, %s356, 3
        %s359 = smul.addr %s358, 4
        %s360 = scalar_lea.vmem %s4, %s359
        %p361 = pneg %p167
        %p362 = pneg %p164
        %p363 = pneg %p188
        %p364 = pneg %p185
        %s365 = smul.u32 64, %s28
        %p366 = scmp.lt.s32.totalorder %s365, 63
        %s367 = scalar_select %p366, %s365, 63
        %s368 = smul.addr %s367, 4
        %s369 = scalar_lea.vmem %s6, %s368
        %p370 = pneg %p214
        %p371 = pneg %p211
        %p372 = pneg %p242
        %p373 = pneg %p239
        %s374 = sand.u32 %s229, 1
        %s375 = scalar_lea.sflag [#allocation6], %s374
        %s376 = sand.u32 %s229, 1
        %s377 = smul.addr %s376, 16
        %s378 = scalar_lea.vmem [#allocation5], %s377
        %s379 = smul.u32 2, %s27
        %p380 = scmp.lt.s32.totalorder %s26, 1
        %s381 = scalar_select %p380, %s26, 1
        %p382 = scmp.lt.s32.totalorder %s379, 1
        %s383 = scalar_select %p382, %s379, 1
        %s384 = smul.addr %s381, 2
        %s385 = sadd.s32 %s383, %s384
        %s386 = smul.addr %s385, 8
        %s387 = scalar_lea.vmem %s0, %s386
        %s388 = smul.u32 2, %s27
        %s389 = smul.u32 %s27, 2
        %s390 = ssub.s32 %s389, 1
        %p391 = scmp.gt.s32.totalorder %s390, 0
        %s392 = scalar_select %p391, %s390, 0
        %p393 = scmp.lt.s32.totalorder %s26, 1
        %s394 = scalar_select %p393, %s26, 1
        %p395 = scmp.lt.s32.totalorder %s392, 1
        %s396 = scalar_select %p395, %s392, 1
        %s397 = smul.addr %s394, 2
        %s398 = sadd.s32 %s396, %s397
        %s399 = smul.addr %s398, 8
        %s400 = scalar_lea.vmem %s1, %s399
        %s401 = smul.u32 %s27, 2
        %s402 = ssub.s32 %s401, 1
        %p403 = scmp.gt.s32.totalorder %s402, 0
        %s404 = scalar_select %p403, %s402, 0
        %s405 = smul.u32 4, %s28
        %p406 = scmp.lt.s32.totalorder %s405, 3
        %s407 = scalar_select %p406, %s405, 3
        %s408 = smul.addr %s407, 4
        %s409 = scalar_lea.vmem %s4, %s408
        %s410 = smul.u32 4, %s28
        %s411 = smul.u32 64, %s28
        %p412 = scmp.lt.s32.totalorder %s411, 63
        %s413 = scalar_select %p412, %s411, 63
        %s414 = smul.addr %s413, 4
        %s415 = scalar_lea.vmem %s6, %s414
        %s416 = smul.u32 64, %s28
        %s417 = smul.u32 2, %s27
        %p419 = scmp.eq.s32.totalorder %s28, 0
        // Predicated region
        $region49: #{_cmix_pallas.1} parent=47 // pred_check
          %p420 = pneg %p419
        $region50: #{_cmix_pallas.1} parent=47 // pred_check_branch
          %422 = sbr.rel (%p420) target = $region52
        $region51: #{_cmix_pallas.1} parent=47 // pred_region
          %v423 = vld [vmem:[%s387] sm:$0xff]
          %v424 = vld [vmem:[%s387 + $0x8] sm:$0xff]
          %v425 = vld [vmem:[%s2] sm:$0x1]
          %v426 = vld [vmem:[%s3] sm:$0x1]
          %v427 = vrot.slane %v423, 7
          %v428 = vrot.slane %v424, 7
          %v429 = vlaneseq
          %v430 = vshrl.u32 %v429, 7
          %vm431 = vcmp.lt.s32.totalorder %v430, 1
          %v432 = vsel %vm431, %v427, %v428
          %v433 = vsel %vm431, %v428, %v427
          %v434 = vld [vmem:[%s400] sm:$0xff]
          %p435 = scmp.gt.s32.totalorder %s27, 0
          %s436 = scalar_select %p435, 1, 0
          %s437 = scvt.s32.f32 %s436
          %v438 = vstv %s437
          %v439 = vmul.f32 %v434, %v438
          %v440 = vadd.s32 %v430, 8
          %vm441 = vcmp.eq.s32.totalorder %v430, 0
          %vm442 = vcmp.eq.s32.totalorder %v440, 0
          %v443 = vlaneseq
          %v444 = vshrl.u32 %v443, 7
          %v445 = vsub.s32 7, %v444
          %v446 = vrot.slane %v439, %v445
          %v447 = vsel %vm441, %v446, %v433
          %v448 = vsel %vm442, %v446, %v432
          %v449 = vsub.f32 %v447, %v423
          %v450 = vsub.f32 %v448, %v424
          %v452 = vlaneseq
          %v453 = vshrl.u32 %v452, 7
          %v454 = vsub.s32 0, %v453
          %v455 = vrot.slane %v425, %v454
          %v457 = vmul.f32 %v449, %v455
          %v458 = vmul.f32 %v450, %v455
          %v459 = vadd.f32 %v423, %v457
          %v460 = vadd.f32 %v424, %v458
          %v461 = vpack.c.bf16 %v460, %v459
          %v463 = vlaneseq
          %v464 = vshrl.u32 %v463, 7
          %v465 = vsub.s32 0, %v464
          %v466 = vrot.slane %v426, %v465
          %v468 = vmul.f32 %v449, %v466
          %v469 = vmul.f32 %v450, %v466
          %v470 = vadd.f32 %v423, %v468
          %v471 = vadd.f32 %v424, %v469
          %v472 = vpack.c.bf16 %v471, %v470
          %473 = vst [vmem:[#allocation2] sm:$0xff] %v461
          %474 = vst [vmem:[#allocation3] sm:$0xff] 0.0
          %475 = vst [vmem:[#allocation3 + $0x8] sm:$0xff] 0.0
          %v476 = vld [vmem:[%s5] sm:$0xf]
          %v477 = vld [vmem:[%s5 + $0x4] sm:$0xf]
          %v478 = vld [vmem:[%s5 + $0x8] sm:$0xf]
          %v479 = vld [vmem:[%s5 + $0xc] sm:$0xf]
          %v480 = vld [vmem:[%s5 + $0x10] sm:$0xf]
          %v481 = vld [vmem:[%s5 + $0x14] sm:$0xf]
          %v482 = vld [vmem:[%s5 + $0x18] sm:$0xf]
          %v483 = vld [vmem:[%s5 + $0x1c] sm:$0xf]
          %v484 = vld [vmem:[%s5 + $0x20] sm:$0xf]
          %v485 = vld [vmem:[%s5 + $0x24] sm:$0xf]
          %v486 = vld [vmem:[%s5 + $0x28] sm:$0xf]
          %v487 = vld [vmem:[%s5 + $0x2c] sm:$0xf]
          %v488 = vld [vmem:[%s5 + $0x30] sm:$0xf]
          %v489 = vld [vmem:[%s5 + $0x34] sm:$0xf]
          %v490 = vld [vmem:[%s5 + $0x38] sm:$0xf]
          %v491 = vld [vmem:[%s5 + $0x3c] sm:$0xf]
          %v508 = vunpack.c.l.b16 %v476
          %v509 = vunpack.c.l.b16 %v477
          %v510 = vunpack.c.l.b16 %v478
          %v511 = vunpack.c.l.b16 %v479
          %v512 = vunpack.c.l.b16 %v480
          %v513 = vunpack.c.l.b16 %v481
          %v514 = vunpack.c.l.b16 %v482
          %v515 = vunpack.c.l.b16 %v483
          %v516 = vunpack.c.l.b16 %v484
          %v517 = vunpack.c.l.b16 %v485
          %v518 = vunpack.c.l.b16 %v486
          %v519 = vunpack.c.l.b16 %v487
          %v520 = vunpack.c.l.b16 %v488
          %v521 = vunpack.c.l.b16 %v489
          %v522 = vunpack.c.l.b16 %v490
          %v523 = vunpack.c.l.b16 %v491
          %v524 = vpack.c.b16 %v509, %v508
          %v525 = vpack.c.b16 %v511, %v510
          %v526 = vpack.c.b16 %v513, %v512
          %v527 = vpack.c.b16 %v515, %v514
          %v528 = vpack.c.b16 %v517, %v516
          %v529 = vpack.c.b16 %v519, %v518
          %v530 = vpack.c.b16 %v521, %v520
          %v531 = vpack.c.b16 %v523, %v522
          %540 = vmatprep.subr.bf16.mxu0 0
          %541 = vmatpush1.bf16.msra.mxu0 %v524
          %542 = vmatprep.subr.bf16.mxu0 0
          %543 = vmatpush1.bf16.msra.mxu0 %v525
          %544 = vmatprep.subr.bf16.mxu0 0
          %545 = vmatpush1.bf16.msra.mxu0 %v526
          %546 = vmatprep.subr.bf16.mxu0 0
          %547 = vmatpush1.bf16.msra.mxu0 %v527
          %548 = vmatprep.subr.bf16.mxu0 0
          %549 = vmatpush1.bf16.msra.mxu0 %v528
          %550 = vmatprep.subr.bf16.mxu0 0
          %551 = vmatpush1.bf16.msra.mxu0 %v529
          %552 = vmatprep.subr.bf16.mxu0 0
          %553 = vmatpush1.bf16.msra.mxu0 %v530
          %554 = vmatprep.subr.bf16.mxu0 0
          %555 = vmatpush1.bf16.msra.mxu0 %v531
          %556 = vmatprep.subr.bf16.mxu0 0
          %557 = vmatpush1.bf16.msra.mxu0 0
          %558 = vmatprep.subr.bf16.mxu0 0
          %559 = vmatpush1.bf16.msra.mxu0 0
          %560 = vmatprep.subr.bf16.mxu0 0
          %561 = vmatpush1.bf16.msra.mxu0 0
          %562 = vmatprep.subr.bf16.mxu0 0
          %563 = vmatpush1.bf16.msra.mxu0 0
          %564 = vmatprep.subr.bf16.mxu0 0
          %565 = vmatpush1.bf16.msra.mxu0 0
          %566 = vmatprep.subr.bf16.mxu0 0
          %567 = vmatpush1.bf16.msra.mxu0 0
          %568 = vmatprep.subr.bf16.mxu0 0
          %569 = vmatpush1.bf16.msra.mxu0 0
          %570 = vmatprep.subr.bf16.mxu0 0
          %571 = vmatpush1.bf16.msra.mxu0 0
          %572 = vmatprep.mubr.bf16.mxu0 0
          %573 = vmatmul.mubr.bf16.gmra.mrb[0].mxu0 %v472
          %v574 = vpop.f32.mrb[0].mxu0
          %v575 = vadd.f32 0.0, %v574
          %v576 = vpop.f32.mrb[0].mxu0
          %v577 = vpop.f32.mrb[0].mxu0
          %v578 = vadd.f32 0.0, %v577
          %v579 = vpop.f32.mrb[0].mxu0
          %580 = vdwg.mxu0
          %581 = vst [vmem:[#allocation4] sm:$0xff] %v575
          %582 = vst [vmem:[#allocation4 + $0x8] sm:$0xff] %v578
        $region52: #{_cmix_pallas.1} parent=47 // pred_fallthru
          _
        %v583 = vld [vmem:[#allocation2] sm:$0xff]
        %v584 = vld [vmem:[%s409] sm:$0xff]
        %v585 = vld [vmem:[%s409 + $0x8] sm:$0xff]
        %v586 = vld [vmem:[%s409 + $0x10] sm:$0xff]
        %v587 = vld [vmem:[%s409 + $0x18] sm:$0xff]
        %v588 = vld [vmem:[%s409 + $0x20] sm:$0xff]
        %v589 = vld [vmem:[%s409 + $0x28] sm:$0xff]
        %v590 = vld [vmem:[%s409 + $0x30] sm:$0xff]
        %v591 = vld [vmem:[%s409 + $0x38] sm:$0xff]
        %v592 = vld [vmem:[%s409 + $0x40] sm:$0xff]
        %v593 = vld [vmem:[%s409 + $0x48] sm:$0xff]
        %v594 = vld [vmem:[%s409 + $0x50] sm:$0xff]
        %v595 = vld [vmem:[%s409 + $0x58] sm:$0xff]
        %v596 = vld [vmem:[%s409 + $0x60] sm:$0xff]
        %v597 = vld [vmem:[%s409 + $0x68] sm:$0xff]
        %v598 = vld [vmem:[%s409 + $0x70] sm:$0xff]
        %v599 = vld [vmem:[%s409 + $0x78] sm:$0xff]
        %v600 = vld [vmem:[%s409 + $0x80] sm:$0xff]
        %v601 = vld [vmem:[%s409 + $0x88] sm:$0xff]
        %v602 = vld [vmem:[%s409 + $0x90] sm:$0xff]
        %v603 = vld [vmem:[%s409 + $0x98] sm:$0xff]
        %v604 = vld [vmem:[%s409 + $0xa0] sm:$0xff]
        %v605 = vld [vmem:[%s409 + $0xa8] sm:$0xff]
        %v606 = vld [vmem:[%s409 + $0xb0] sm:$0xff]
        %v607 = vld [vmem:[%s409 + $0xb8] sm:$0xff]
        %v608 = vld [vmem:[%s409 + $0xc0] sm:$0xff]
        %v609 = vld [vmem:[%s409 + $0xc8] sm:$0xff]
        %v610 = vld [vmem:[%s409 + $0xd0] sm:$0xff]
        %v611 = vld [vmem:[%s409 + $0xd8] sm:$0xff]
        %v612 = vld [vmem:[%s409 + $0xe0] sm:$0xff]
        %v613 = vld [vmem:[%s409 + $0xe8] sm:$0xff]
        %v614 = vld [vmem:[%s409 + $0xf0] sm:$0xff]
        %v615 = vld [vmem:[%s409 + $0xf8] sm:$0xff]
        %v648 = vunpack.c.l.b16 %v584
        %v649 = vunpack.c.h.b16 %v584
        %v650 = vunpack.c.l.b16 %v585
        %v651 = vunpack.c.h.b16 %v585
        %v652 = vunpack.c.l.b16 %v586
        %v653 = vunpack.c.h.b16 %v586
        %v654 = vunpack.c.l.b16 %v587
        %v655 = vunpack.c.h.b16 %v587
        %v656 = vunpack.c.l.b16 %v588
        %v657 = vunpack.c.h.b16 %v588
        %v658 = vunpack.c.l.b16 %v589
        %v659 = vunpack.c.h.b16 %v589
        %v660 = vunpack.c.l.b16 %v590
        %v661 = vunpack.c.h.b16 %v590
        %v662 = vunpack.c.l.b16 %v591
        %v663 = vunpack.c.h.b16 %v591
        %v664 = vunpack.c.l.b16 %v592
        %v665 = vunpack.c.h.b16 %v592
        %v666 = vunpack.c.l.b16 %v593
        %v667 = vunpack.c.h.b16 %v593
        %v668 = vunpack.c.l.b16 %v594
        %v669 = vunpack.c.h.b16 %v594
        %v670 = vunpack.c.l.b16 %v595
        %v671 = vunpack.c.h.b16 %v595
        %v672 = vunpack.c.l.b16 %v596
        %v673 = vunpack.c.h.b16 %v596
        %v674 = vunpack.c.l.b16 %v597
        %v675 = vunpack.c.h.b16 %v597
        %v676 = vunpack.c.l.b16 %v598
        %v677 = vunpack.c.h.b16 %v598
        %v678 = vunpack.c.l.b16 %v599
        %v679 = vunpack.c.h.b16 %v599
        %v680 = vunpack.c.l.b16 %v600
        %v681 = vunpack.c.h.b16 %v600
        %v682 = vunpack.c.l.b16 %v601
        %v683 = vunpack.c.h.b16 %v601
        %v684 = vunpack.c.l.b16 %v602
        %v685 = vunpack.c.h.b16 %v602
        %v686 = vunpack.c.l.b16 %v603
        %v687 = vunpack.c.h.b16 %v603
        %v688 = vunpack.c.l.b16 %v604
        %v689 = vunpack.c.h.b16 %v604
        %v690 = vunpack.c.l.b16 %v605
        %v691 = vunpack.c.h.b16 %v605
        %v692 = vunpack.c.l.b16 %v606
        %v693 = vunpack.c.h.b16 %v606
        %v694 = vunpack.c.l.b16 %v607
        %v695 = vunpack.c.h.b16 %v607
        %v696 = vunpack.c.l.b16 %v608
        %v697 = vunpack.c.h.b16 %v608
        %v698 = vunpack.c.l.b16 %v609
        %v699 = vunpack.c.h.b16 %v609
        %v700 = vunpack.c.l.b16 %v610
        %v701 = vunpack.c.h.b16 %v610
        %v702 = vunpack.c.l.b16 %v611
        %v703 = vunpack.c.h.b16 %v611
        %v704 = vunpack.c.l.b16 %v612
        %v705 = vunpack.c.h.b16 %v612
        %v706 = vunpack.c.l.b16 %v613
        %v707 = vunpack.c.h.b16 %v613
        %v708 = vunpack.c.l.b16 %v614
        %v709 = vunpack.c.h.b16 %v614
        %v710 = vunpack.c.l.b16 %v615
        %v711 = vunpack.c.h.b16 %v615
        %v712 = vpack.c.b16 %v652, %v648
        %v713 = vpack.c.b16 %v653, %v649
        %v714 = vpack.c.b16 %v654, %v650
        %v715 = vpack.c.b16 %v655, %v651
        %v716 = vpack.c.b16 %v660, %v656
        %v717 = vpack.c.b16 %v661, %v657
        %v718 = vpack.c.b16 %v662, %v658
        %v719 = vpack.c.b16 %v663, %v659
        %v720 = vpack.c.b16 %v668, %v664
        %v721 = vpack.c.b16 %v669, %v665
        %v722 = vpack.c.b16 %v670, %v666
        %v723 = vpack.c.b16 %v671, %v667
        %v724 = vpack.c.b16 %v676, %v672
        %v725 = vpack.c.b16 %v677, %v673
        %v726 = vpack.c.b16 %v678, %v674
        %v727 = vpack.c.b16 %v679, %v675
        %v728 = vpack.c.b16 %v684, %v680
        %v729 = vpack.c.b16 %v685, %v681
        %v730 = vpack.c.b16 %v686, %v682
        %v731 = vpack.c.b16 %v687, %v683
        %v732 = vpack.c.b16 %v692, %v688
        %v733 = vpack.c.b16 %v693, %v689
        %v734 = vpack.c.b16 %v694, %v690
        %v735 = vpack.c.b16 %v695, %v691
        %v736 = vpack.c.b16 %v700, %v696
        %v737 = vpack.c.b16 %v701, %v697
        %v738 = vpack.c.b16 %v702, %v698
        %v739 = vpack.c.b16 %v703, %v699
        %v740 = vpack.c.b16 %v708, %v704
        %v741 = vpack.c.b16 %v709, %v705
        %v742 = vpack.c.b16 %v710, %v706
        %v743 = vpack.c.b16 %v711, %v707
        %776 = vmatprep.subr.bf16.mxu0 %v713
        %777 = vmatpush1.bf16.msra.mxu0 %v712
        %778 = vmatprep.subr.bf16.mxu0 %v717
        %779 = vmatpush1.bf16.msra.mxu0 %v716
        %780 = vmatprep.subr.bf16.mxu0 %v721
        %781 = vmatpush1.bf16.msra.mxu0 %v720
        %782 = vmatprep.subr.bf16.mxu0 %v725
        %783 = vmatpush1.bf16.msra.mxu0 %v724
        %784 = vmatprep.subr.bf16.mxu0 %v729
        %785 = vmatpush1.bf16.msra.mxu0 %v728
        %786 = vmatprep.subr.bf16.mxu0 %v733
        %787 = vmatpush1.bf16.msra.mxu0 %v732
        %788 = vmatprep.subr.bf16.mxu0 %v737
        %789 = vmatpush1.bf16.msra.mxu0 %v736
        %790 = vmatprep.subr.bf16.mxu0 %v741
        %791 = vmatpush1.bf16.msra.mxu0 %v740
        %792 = vmatprep.subr.bf16.mxu0 0
        %793 = vmatpush1.bf16.msra.mxu0 0
        %794 = vmatprep.subr.bf16.mxu0 0
        %795 = vmatpush1.bf16.msra.mxu0 0
        %796 = vmatprep.subr.bf16.mxu0 0
        %797 = vmatpush1.bf16.msra.mxu0 0
        %798 = vmatprep.subr.bf16.mxu0 0
        %799 = vmatpush1.bf16.msra.mxu0 0
        %800 = vmatprep.subr.bf16.mxu0 0
        %801 = vmatpush1.bf16.msra.mxu0 0
        %802 = vmatprep.subr.bf16.mxu0 0
        %803 = vmatpush1.bf16.msra.mxu0 0
        %804 = vmatprep.subr.bf16.mxu0 0
        %805 = vmatpush1.bf16.msra.mxu0 0
        %806 = vmatprep.subr.bf16.mxu0 0
        %807 = vmatpush1.bf16.msra.mxu0 0
        %808 = vmatprep.mubr.bf16.mxu0 0
        %809 = vmatmul.mubr.bf16.gmra.mrb[0].mxu0 %v583
        %v810 = vpop.f32.mrb[0].mxu0
        %v811 = vadd.f32 0.0, %v810
        %v812 = vpop.f32.mrb[0].mxu0
        %v813 = vadd.f32 0.0, %v812
        %v814 = vpop.f32.mrb[0].mxu0
        %v815 = vadd.f32 0.0, %v814
        %v816 = vpop.f32.mrb[0].mxu0
        %v817 = vadd.f32 0.0, %v816
        %818 = vdwg.mxu0
        %819 = vmatprep.subr.bf16.mxu0 %v715
        %820 = vmatpush1.bf16.msra.mxu0 %v714
        %821 = vmatprep.subr.bf16.mxu0 %v719
        %822 = vmatpush1.bf16.msra.mxu0 %v718
        %823 = vmatprep.subr.bf16.mxu0 %v723
        %824 = vmatpush1.bf16.msra.mxu0 %v722
        %825 = vmatprep.subr.bf16.mxu0 %v727
        %826 = vmatpush1.bf16.msra.mxu0 %v726
        %827 = vmatprep.subr.bf16.mxu0 %v731
        %828 = vmatpush1.bf16.msra.mxu0 %v730
        %829 = vmatprep.subr.bf16.mxu0 %v735
        %830 = vmatpush1.bf16.msra.mxu0 %v734
        %831 = vmatprep.subr.bf16.mxu0 %v739
        %832 = vmatpush1.bf16.msra.mxu0 %v738
        %833 = vmatprep.subr.bf16.mxu0 %v743
        %834 = vmatpush1.bf16.msra.mxu0 %v742
        %835 = vmatprep.subr.bf16.mxu0 0
        %836 = vmatpush1.bf16.msra.mxu0 0
        %837 = vmatprep.subr.bf16.mxu0 0
        %838 = vmatpush1.bf16.msra.mxu0 0
        %839 = vmatprep.subr.bf16.mxu0 0
        %840 = vmatpush1.bf16.msra.mxu0 0
        %841 = vmatprep.subr.bf16.mxu0 0
        %842 = vmatpush1.bf16.msra.mxu0 0
        %843 = vmatprep.subr.bf16.mxu0 0
        %844 = vmatpush1.bf16.msra.mxu0 0
        %845 = vmatprep.subr.bf16.mxu0 0
        %846 = vmatpush1.bf16.msra.mxu0 0
        %847 = vmatprep.subr.bf16.mxu0 0
        %848 = vmatpush1.bf16.msra.mxu0 0
        %849 = vmatprep.subr.bf16.mxu0 0
        %850 = vmatpush1.bf16.msra.mxu0 0
        %851 = vmatprep.mubr.bf16.mxu0 0
        %852 = vmatmul.mubr.bf16.gmra.mrb[0].mxu0 %v583
        %v853 = vpop.f32.mrb[0].mxu0
        %v854 = vadd.f32 0.0, %v853
        %v855 = vpop.f32.mrb[0].mxu0
        %v856 = vadd.f32 0.0, %v855
        %v857 = vpop.f32.mrb[0].mxu0
        %v858 = vadd.f32 0.0, %v857
        %v859 = vpop.f32.mrb[0].mxu0
        %v860 = vadd.f32 0.0, %v859
        %861 = vdwg.mxu0
        %v862 = vmax.f32 %v811, 0.0
        %v863 = vmax.f32 %v813, 0.0
        %v864 = vmax.f32 %v854, 0.0
        %v865 = vmax.f32 %v856, 0.0
        %v866 = vmax.f32 %v815, 0.0
        %v867 = vmax.f32 %v817, 0.0
        %v868 = vmax.f32 %v858, 0.0
        %v869 = vmax.f32 %v860, 0.0
        %v870 = vmul.f32 %v862, %v862
        %v871 = vmul.f32 %v863, %v863
        %v872 = vmul.f32 %v864, %v864
        %v873 = vmul.f32 %v865, %v865
        %v874 = vmul.f32 %v866, %v866
        %v875 = vmul.f32 %v867, %v867
        %v876 = vmul.f32 %v868, %v868
        %v877 = vmul.f32 %v869, %v869
        %v878 = vld [vmem:[#allocation3] sm:$0xff]
        %v879 = vld [vmem:[#allocation3 + $0x8] sm:$0xff]
        %v880 = vpack.c.bf16 %v874, %v870
        %v881 = vpack.c.bf16 %v875, %v871
        %v882 = vpack.c.bf16 %v876, %v872
        %v883 = vpack.c.bf16 %v877, %v873
        %v884 = vld [vmem:[%s415] sm:$0xf]
        %v885 = vld [vmem:[%s415 + $0x4] sm:$0xf]
        %v886 = vld [vmem:[%s415 + $0x8] sm:$0xf]
        %v887 = vld [vmem:[%s415 + $0xc] sm:$0xf]
        %v888 = vld [vmem:[%s415 + $0x10] sm:$0xf]
        %v889 = vld [vmem:[%s415 + $0x14] sm:$0xf]
        %v890 = vld [vmem:[%s415 + $0x18] sm:$0xf]
        %v891 = vld [vmem:[%s415 + $0x1c] sm:$0xf]
        %v892 = vld [vmem:[%s415 + $0x20] sm:$0xf]
        %v893 = vld [vmem:[%s415 + $0x24] sm:$0xf]
        %v894 = vld [vmem:[%s415 + $0x28] sm:$0xf]
        %v895 = vld [vmem:[%s415 + $0x2c] sm:$0xf]
        %v896 = vld [vmem:[%s415 + $0x30] sm:$0xf]
        %v897 = vld [vmem:[%s415 + $0x34] sm:$0xf]
        %v898 = vld [vmem:[%s415 + $0x38] sm:$0xf]
        %v899 = vld [vmem:[%s415 + $0x3c] sm:$0xf]
        %v900 = vld [vmem:[%s415 + $0x40] sm:$0xf]
        %v901 = vld [vmem:[%s415 + $0x44] sm:$0xf]
        %v902 = vld [vmem:[%s415 + $0x48] sm:$0xf]
        %v903 = vld [vmem:[%s415 + $0x4c] sm:$0xf]
        %v904 = vld [vmem:[%s415 + $0x50] sm:$0xf]
        %v905 = vld [vmem:[%s415 + $0x54] sm:$0xf]
        %v906 = vld [vmem:[%s415 + $0x58] sm:$0xf]
        %v907 = vld [vmem:[%s415 + $0x5c] sm:$0xf]
        %v908 = vld [vmem:[%s415 + $0x60] sm:$0xf]
        %v909 = vld [vmem:[%s415 + $0x64] sm:$0xf]
        %v910 = vld [vmem:[%s415 + $0x68] sm:$0xf]
        %v911 = vld [vmem:[%s415 + $0x6c] sm:$0xf]
        %v912 = vld [vmem:[%s415 + $0x70] sm:$0xf]
        %v913 = vld [vmem:[%s415 + $0x74] sm:$0xf]
        %v914 = vld [vmem:[%s415 + $0x78] sm:$0xf]
        %v915 = vld [vmem:[%s415 + $0x7c] sm:$0xf]
        %v916 = vld [vmem:[%s415 + $0x80] sm:$0xf]
        %v917 = vld [vmem:[%s415 + $0x84] sm:$0xf]
        %v918 = vld [vmem:[%s415 + $0x88] sm:$0xf]
        %v919 = vld [vmem:[%s415 + $0x8c] sm:$0xf]
        %v920 = vld [vmem:[%s415 + $0x90] sm:$0xf]
        %v921 = vld [vmem:[%s415 + $0x94] sm:$0xf]
        %v922 = vld [vmem:[%s415 + $0x98] sm:$0xf]
        %v923 = vld [vmem:[%s415 + $0x9c] sm:$0xf]
        %v924 = vld [vmem:[%s415 + $0xa0] sm:$0xf]
        %v925 = vld [vmem:[%s415 + $0xa4] sm:$0xf]
        %v926 = vld [vmem:[%s415 + $0xa8] sm:$0xf]
        %v927 = vld [vmem:[%s415 + $0xac] sm:$0xf]
        %v928 = vld [vmem:[%s415 + $0xb0] sm:$0xf]
        %v929 = vld [vmem:[%s415 + $0xb4] sm:$0xf]
        %v930 = vld [vmem:[%s415 + $0xb8] sm:$0xf]
        %v931 = vld [vmem:[%s415 + $0xbc] sm:$0xf]
        %v932 = vld [vmem:[%s415 + $0xc0] sm:$0xf]
        %v933 = vld [vmem:[%s415 + $0xc4] sm:$0xf]
        %v934 = vld [vmem:[%s415 + $0xc8] sm:$0xf]
        %v935 = vld [vmem:[%s415 + $0xcc] sm:$0xf]
        %v936 = vld [vmem:[%s415 + $0xd0] sm:$0xf]
        %v937 = vld [vmem:[%s415 + $0xd4] sm:$0xf]
        %v938 = vld [vmem:[%s415 + $0xd8] sm:$0xf]
        %v939 = vld [vmem:[%s415 + $0xdc] sm:$0xf]
        %v940 = vld [vmem:[%s415 + $0xe0] sm:$0xf]
        %v941 = vld [vmem:[%s415 + $0xe4] sm:$0xf]
        %v942 = vld [vmem:[%s415 + $0xe8] sm:$0xf]
        %v943 = vld [vmem:[%s415 + $0xec] sm:$0xf]
        %v944 = vld [vmem:[%s415 + $0xf0] sm:$0xf]
        %v945 = vld [vmem:[%s415 + $0xf4] sm:$0xf]
        %v946 = vld [vmem:[%s415 + $0xf8] sm:$0xf]
        %v947 = vld [vmem:[%s415 + $0xfc] sm:$0xf]
        %v1012 = vunpack.c.l.b16 %v884
        %v1013 = vunpack.c.l.b16 %v885
        %v1014 = vunpack.c.l.b16 %v886
        %v1015 = vunpack.c.l.b16 %v887
        %v1016 = vunpack.c.l.b16 %v888
        %v1017 = vunpack.c.l.b16 %v889
        %v1018 = vunpack.c.l.b16 %v890
        %v1019 = vunpack.c.l.b16 %v891
        %v1020 = vunpack.c.l.b16 %v892
        %v1021 = vunpack.c.l.b16 %v893
        %v1022 = vunpack.c.l.b16 %v894
        %v1023 = vunpack.c.l.b16 %v895
        %v1024 = vunpack.c.l.b16 %v896
        %v1025 = vunpack.c.l.b16 %v897
        %v1026 = vunpack.c.l.b16 %v898
        %v1027 = vunpack.c.l.b16 %v899
        %v1028 = vunpack.c.l.b16 %v900
        %v1029 = vunpack.c.l.b16 %v901
        %v1030 = vunpack.c.l.b16 %v902
        %v1031 = vunpack.c.l.b16 %v903
        %v1032 = vunpack.c.l.b16 %v904
        %v1033 = vunpack.c.l.b16 %v905
        %v1034 = vunpack.c.l.b16 %v906
        %v1035 = vunpack.c.l.b16 %v907
        %v1036 = vunpack.c.l.b16 %v908
        %v1037 = vunpack.c.l.b16 %v909
        %v1038 = vunpack.c.l.b16 %v910
        %v1039 = vunpack.c.l.b16 %v911
        %v1040 = vunpack.c.l.b16 %v912
        %v1041 = vunpack.c.l.b16 %v913
        %v1042 = vunpack.c.l.b16 %v914
        %v1043 = vunpack.c.l.b16 %v915
        %v1044 = vunpack.c.l.b16 %v916
        %v1045 = vunpack.c.l.b16 %v917
        %v1046 = vunpack.c.l.b16 %v918
        %v1047 = vunpack.c.l.b16 %v919
        %v1048 = vunpack.c.l.b16 %v920
        %v1049 = vunpack.c.l.b16 %v921
        %v1050 = vunpack.c.l.b16 %v922
        %v1051 = vunpack.c.l.b16 %v923
        %v1052 = vunpack.c.l.b16 %v924
        %v1053 = vunpack.c.l.b16 %v925
        %v1054 = vunpack.c.l.b16 %v926
        %v1055 = vunpack.c.l.b16 %v927
        %v1056 = vunpack.c.l.b16 %v928
        %v1057 = vunpack.c.l.b16 %v929
        %v1058 = vunpack.c.l.b16 %v930
        %v1059 = vunpack.c.l.b16 %v931
        %v1060 = vunpack.c.l.b16 %v932
        %v1061 = vunpack.c.l.b16 %v933
        %v1062 = vunpack.c.l.b16 %v934
        %v1063 = vunpack.c.l.b16 %v935
        %v1064 = vunpack.c.l.b16 %v936
        %v1065 = vunpack.c.l.b16 %v937
        %v1066 = vunpack.c.l.b16 %v938
        %v1067 = vunpack.c.l.b16 %v939
        %v1068 = vunpack.c.l.b16 %v940
        %v1069 = vunpack.c.l.b16 %v941
        %v1070 = vunpack.c.l.b16 %v942
        %v1071 = vunpack.c.l.b16 %v943
        %v1072 = vunpack.c.l.b16 %v944
        %v1073 = vunpack.c.l.b16 %v945
        %v1074 = vunpack.c.l.b16 %v946
        %v1075 = vunpack.c.l.b16 %v947
        %v1076 = vpack.c.b16 %v1013, %v1012
        %v1077 = vpack.c.b16 %v1015, %v1014
        %v1078 = vpack.c.b16 %v1017, %v1016
        %v1079 = vpack.c.b16 %v1019, %v1018
        %v1080 = vpack.c.b16 %v1021, %v1020
        %v1081 = vpack.c.b16 %v1023, %v1022
        %v1082 = vpack.c.b16 %v1025, %v1024
        %v1083 = vpack.c.b16 %v1027, %v1026
        %v1084 = vpack.c.b16 %v1029, %v1028
        %v1085 = vpack.c.b16 %v1031, %v1030
        %v1086 = vpack.c.b16 %v1033, %v1032
        %v1087 = vpack.c.b16 %v1035, %v1034
        %v1088 = vpack.c.b16 %v1037, %v1036
        %v1089 = vpack.c.b16 %v1039, %v1038
        %v1090 = vpack.c.b16 %v1041, %v1040
        %v1091 = vpack.c.b16 %v1043, %v1042
        %v1092 = vpack.c.b16 %v1045, %v1044
        %v1093 = vpack.c.b16 %v1047, %v1046
        %v1094 = vpack.c.b16 %v1049, %v1048
        %v1095 = vpack.c.b16 %v1051, %v1050
        %v1096 = vpack.c.b16 %v1053, %v1052
        %v1097 = vpack.c.b16 %v1055, %v1054
        %v1098 = vpack.c.b16 %v1057, %v1056
        %v1099 = vpack.c.b16 %v1059, %v1058
        %v1100 = vpack.c.b16 %v1061, %v1060
        %v1101 = vpack.c.b16 %v1063, %v1062
        %v1102 = vpack.c.b16 %v1065, %v1064
        %v1103 = vpack.c.b16 %v1067, %v1066
        %v1104 = vpack.c.b16 %v1069, %v1068
        %v1105 = vpack.c.b16 %v1071, %v1070
        %v1106 = vpack.c.b16 %v1073, %v1072
        %v1107 = vpack.c.b16 %v1075, %v1074
        %1140 = vmatprep.subr.bf16.mxu0 0
        %1141 = vmatpush1.bf16.msra.mxu0 %v1076
        %1142 = vmatprep.subr.bf16.mxu0 0
        %1143 = vmatpush1.bf16.msra.mxu0 %v1077
        %1144 = vmatprep.subr.bf16.mxu0 0
        %1145 = vmatpush1.bf16.msra.mxu0 %v1078
        %1146 = vmatprep.subr.bf16.mxu0 0
        %1147 = vmatpush1.bf16.msra.mxu0 %v1079
        %1148 = vmatprep.subr.bf16.mxu0 0
        %1149 = vmatpush1.bf16.msra.mxu0 %v1080
        %1150 = vmatprep.subr.bf16.mxu0 0
        %1151 = vmatpush1.bf16.msra.mxu0 %v1081
        %1152 = vmatprep.subr.bf16.mxu0 0
        %1153 = vmatpush1.bf16.msra.mxu0 %v1082
        %1154 = vmatprep.subr.bf16.mxu0 0
        %1155 = vmatpush1.bf16.msra.mxu0 %v1083
        %1156 = vmatprep.subr.bf16.mxu0 0
        %1157 = vmatpush1.bf16.msra.mxu0 %v1084
        %1158 = vmatprep.subr.bf16.mxu0 0
        %1159 = vmatpush1.bf16.msra.mxu0 %v1085
        %1160 = vmatprep.subr.bf16.mxu0 0
        %1161 = vmatpush1.bf16.msra.mxu0 %v1086
        %1162 = vmatprep.subr.bf16.mxu0 0
        %1163 = vmatpush1.bf16.msra.mxu0 %v1087
        %1164 = vmatprep.subr.bf16.mxu0 0
        %1165 = vmatpush1.bf16.msra.mxu0 %v1088
        %1166 = vmatprep.subr.bf16.mxu0 0
        %1167 = vmatpush1.bf16.msra.mxu0 %v1089
        %1168 = vmatprep.subr.bf16.mxu0 0
        %1169 = vmatpush1.bf16.msra.mxu0 %v1090
        %1170 = vmatprep.subr.bf16.mxu0 0
        %1171 = vmatpush1.bf16.msra.mxu0 %v1091
        %1172 = vmatprep.mubr.bf16.mxu0 %v881
        %1173 = vmatmul.mubr.bf16.gmra.mrb[0].mxu0 %v880
        %v1174 = vpop.f32.mrb[0].mxu0
        %v1175 = vadd.f32 0.0, %v1174
        %v1176 = vpop.f32.mrb[0].mxu0
        %v1177 = vpop.f32.mrb[0].mxu0
        %v1178 = vadd.f32 0.0, %v1177
        %v1179 = vpop.f32.mrb[0].mxu0
        %1180 = vdwg.mxu0
        %1181 = vmatprep.subr.bf16.mxu0 0
        %1182 = vmatpush1.bf16.msra.mxu0 %v1092
        %1183 = vmatprep.subr.bf16.mxu0 0
        %1184 = vmatpush1.bf16.msra.mxu0 %v1093
        %1185 = vmatprep.subr.bf16.mxu0 0
        %1186 = vmatpush1.bf16.msra.mxu0 %v1094
        %1187 = vmatprep.subr.bf16.mxu0 0
        %1188 = vmatpush1.bf16.msra.mxu0 %v1095
        %1189 = vmatprep.subr.bf16.mxu0 0
        %1190 = vmatpush1.bf16.msra.mxu0 %v1096
        %1191 = vmatprep.subr.bf16.mxu0 0
        %1192 = vmatpush1.bf16.msra.mxu0 %v1097
        %1193 = vmatprep.subr.bf16.mxu0 0
        %1194 = vmatpush1.bf16.msra.mxu0 %v1098
        %1195 = vmatprep.subr.bf16.mxu0 0
        %1196 = vmatpush1.bf16.msra.mxu0 %v1099
        %1197 = vmatprep.subr.bf16.mxu0 0
        %1198 = vmatpush1.bf16.msra.mxu0 %v1100
        %1199 = vmatprep.subr.bf16.mxu0 0
        %1200 = vmatpush1.bf16.msra.mxu0 %v1101
        %1201 = vmatprep.subr.bf16.mxu0 0
        %1202 = vmatpush1.bf16.msra.mxu0 %v1102
        %1203 = vmatprep.subr.bf16.mxu0 0
        %1204 = vmatpush1.bf16.msra.mxu0 %v1103
        %1205 = vmatprep.subr.bf16.mxu0 0
        %1206 = vmatpush1.bf16.msra.mxu0 %v1104
        %1207 = vmatprep.subr.bf16.mxu0 0
        %1208 = vmatpush1.bf16.msra.mxu0 %v1105
        %1209 = vmatprep.subr.bf16.mxu0 0
        %1210 = vmatpush1.bf16.msra.mxu0 %v1106
        %1211 = vmatprep.subr.bf16.mxu0 0
        %1212 = vmatpush1.bf16.msra.mxu0 %v1107
        %1213 = vmatprep.mubr.bf16.mxu0 %v883
        %1214 = vmatmul.mubr.bf16.gmra.mrb[0].mxu0 %v882
        %v1215 = vpop.f32.mrb[0].mxu0
        %v1216 = vadd.f32 %v1175, %v1215
        %v1217 = vpop.f32.mrb[0].mxu0
        %v1218 = vpop.f32.mrb[0].mxu0
        %v1219 = vadd.f32 %v1178, %v1218
        %v1220 = vpop.f32.mrb[0].mxu0
        %1221 = vdwg.mxu0
        %v1222 = vadd.f32 %v878, %v1216
        %v1223 = vadd.f32 %v879, %v1219
        %1224 = vst [vmem:[#allocation3] sm:$0xff] %v1222
        %1225 = vst [vmem:[#allocation3 + $0x8] sm:$0xff] %v1223
        // Predicated region
        $region53: #{_cmix_pallas.1} parent=47 // pred_check
          %p1226 = pneg %p419
        $region54: #{_cmix_pallas.1} parent=47 // pred_check_branch
          %1228 = sbr.rel (%p1226) target = $region56
        $region55: #{_cmix_pallas.1} parent=47 // pred_region
          %v1229 = vld [vmem:[#allocation4] sm:$0xff]
          %v1230 = vld [vmem:[#allocation4 + $0x8] sm:$0xff]
          %v1231 = vxor.u32 %v1229, 2147483648
          %v1232 = vxor.u32 %v1230, 2147483648
          %v1233 = vmul.f32 %v1231, 1.442695
          %v1234 = vpow.pop %v1233
          %v1235 = vmul.f32 %v1232, 1.442695
          %v1236 = vpow.pop %v1235
          %v1237 = vadd.f32 %v1234, 1.0
          %v1238 = vadd.f32 %v1236, 1.0
          %v1239 = vrcp.pop %v1237
          %v1240 = vmul.f32 1.0, %v1239
          %v1241 = vrcp.pop %v1238
          %v1242 = vmul.f32 1.0, %v1241
          %v1243 = vld [vmem:[#allocation3] sm:$0xff]
          %v1244 = vld [vmem:[#allocation3 + $0x8] sm:$0xff]
          %v1245 = vmul.f32 %v1240, %v1243
          %v1246 = vmul.f32 %v1242, %v1244
          %1247 = vst [vmem:[%s378] sm:$0xff] %v1245
          %1248 = vst [vmem:[%s378 + $0x8] sm:$0xff] %v1246
        $region56: #{_cmix_pallas.1} parent=47 // pred_fallthru
          _
        %s1249 = sand.u32 %s229, 1
        %s1250 = scalar_lea.sflag [#allocation6], %s1249
        %s1251 = sand.u32 %s229, 1
        %s1252 = smul.addr %s1251, 16
        %s1253 = scalar_lea.vmem [#allocation5], %s1252
        // Predicated region
        $region57: #{_cmix_pallas.1} parent=47 // pred_check
          %p1254 = pneg %p239
        $region58: #{_cmix_pallas.1} parent=47 // pred_check_branch
          %1256 = sbr.rel (%p1254) target = $region60
        $region59: #{_cmix_pallas.1} parent=47 // pred_region
          %s1257 = smul.u32 2, %s27
          %s1259 = ssub.s32 256, 256
          %1260 = vsyncadd %s1250, %s1259
          %s1261 = smul.addr %s26, 2
          %s1262 = sadd.s32 %s1257, %s1261
          %s1263 = smul.addr %s1262, 128
          %s1264 = scalar_lea.hbm %s7, %s1263
          %s1265 = sshll.u32 %s1253, 4
          %s1266 = int_to_ptr.vmem [resolvable:$true] %s1265
          %1271 = dma.vmem_to_hbm [thread:$0]  %s1266, 256, %s1264, %s1250, 128, 128, 8
        $region60: #{_cmix_pallas.1} parent=47 // pred_fallthru
          _
      $region48: #{_cmix_pallas.1} parent=5 // pred_fallthru
        _
      %p1272 = scmp.le.s32.totalorder 2, %s16
      // Predicated region
      $region61: #{_cmix_pallas.1} parent=5 // pred_check
        %p1273 = pneg %p1272
      $region62: #{_cmix_pallas.1} parent=5 // pred_check_branch
        %1275 = sbr.rel (%p1273) target = $region64
      $region63: #{_cmix_pallas.1} parent=5 // pred_region
        %s1276 = ssub.s32 %s16, 2
        // Predicated region
        $region65: #{_cmix_pallas.1} parent=63 // pred_check
          %p1277 = pneg %p245
        $region66: #{_cmix_pallas.1} parent=63 // pred_check_branch
          %1279 = sbr.rel (%p1277) target = $region68
        $region67: #{_cmix_pallas.1} parent=63 // pred_region
          %s1280 = sand.u32 %s230, 1
          %s1281 = scalar_lea.sflag [#allocation6], %s1280
          %s1282 = sand.u32 %s230, 1
          %s1283 = smul.addr %s1282, 16
          %s1284 = scalar_lea.vmem [#allocation5], %s1283
          %1285 = dma.done %s1281, 256
        $region68: #{_cmix_pallas.1} parent=63 // pred_fallthru
          _
      $region64: #{_cmix_pallas.1} parent=5 // pred_fallthru
        _
    $region6: #{_cmix_pallas.1} parent=1 // loop_footer
      %s20 = sadd.s32 1, %s16
    $region7: #{_cmix_pallas.1} parent=1 // loop_footer_branch
      %15 = sbr.rel target = $region3
    $region8: #{_cmix_pallas.1} parent=1 // loop_exit
      _
    %1286 = vsyncpa [#allocation6], 1
    %s1287 = scalar_lea.sflag [#allocation6], 1
    %1288 = vsyncpa %s1287, 1

</llo_original>
